<compile_context>
chip_gen: v6e
topology: v6e:2x2x1
jax: 0.10.0
libtpu: 0.0.40
codegen_flags: <defaults>
</compile_context>

<pallas_src>
import functools

import jax
import jax.numpy as jnp
from jax.experimental import pallas as pl
from jax.experimental.pallas import tpu as pltpu


LRELU_SLOPE = 0.01   # PyTorch nn.LeakyReLU default negative_slope
BN_EPS = 1e-5        # PyTorch nn.BatchNorm2d default eps


# -----------------------------------------------------------------------------
# helpers
# -----------------------------------------------------------------------------
def _pick_row_tile(m, cap=512):
    """Largest divisor of m that is <= cap and a multiple of 16; else full m."""
    if m <= cap:
        return m
    for t in range(cap, 15, -1):
        if m % t == 0 and t % 16 == 0:
            return t
    return m


def _conv_w_to_mat(w_pt):
    """PyTorch Conv2d weight (C_out, C_in, kH, kW) -> GEMM matrix
    (kH*kW*C_in, C_out); feature order (kh, kw, ci) matches _im2col."""
    c_out, c_in, kh, kw = w_pt.shape
    w = jnp.transpose(w_pt, (2, 3, 1, 0))                        # (kh, kw, ci, co)
    return w.reshape(kh * kw * c_in, c_out)


def _im2col(x_nhwc, k, stride, padding):
    """Strided patch extraction; feature order (kh, kw, ci)."""
    b, h, w, c = x_nhwc.shape
    ho = (h + 2 * padding - k) // stride + 1
    wo = (w + 2 * padding - k) // stride + 1
    xp = jnp.pad(x_nhwc, ((0, 0), (padding, padding), (padding, padding), (0, 0)))
    patches = []
    for kh in range(k):
        for kw in range(k):
            patches.append(xp[:, kh:kh + stride * (ho - 1) + 1:stride,
                               kw:kw + stride * (wo - 1) + 1:stride, :])
    a = jnp.concatenate(patches, axis=-1)                        # (B, ho, wo, k*k*c)
    return a.reshape(b * ho * wo, k * k * c), (b, ho, wo)


# -----------------------------------------------------------------------------
# Kernel 1: GEMM + bias + LeakyReLU (layer1), M-tiled, "parallel" grid axis
# -----------------------------------------------------------------------------
def _gemm_bias_lrelu_kernel(a_ref, w_ref, b_ref, o_ref, *, slope):
    acc = jnp.dot(a_ref[...], w_ref[...], preferred_element_type=jnp.float32)
    acc = acc + b_ref[...]
    o_ref[...] = jnp.maximum(acc, slope * acc).astype(o_ref.dtype)


def gemm_bias_lrelu(a, w, b, *, out_dtype=jnp.bfloat16, slope=LRELU_SLOPE):
    m, k = a.shape
    k2, n = w.shape
    assert k == k2
    bias = b.reshape(1, n).astype(jnp.float32)
    tm = _pick_row_tile(m)
    cost = pl.CostEstimate(
        flops=2 * m * k * n + 2 * m * n,
        transcendentals=0,
        bytes_accessed=int(a.size * a.dtype.itemsize + w.size * w.dtype.itemsize
                           + m * n * jnp.dtype(out_dtype).itemsize),
    )
    return pl.pallas_call(
        functools.partial(_gemm_bias_lrelu_kernel, slope=slope),
        out_shape=jax.ShapeDtypeStruct((m, n), out_dtype),
        grid_spec=pltpu.PrefetchScalarGridSpec(
            num_scalar_prefetch=0,
            grid=(m // tm,),
            in_specs=[
                pl.BlockSpec((tm, k), lambda i: (i, 0)),
                pl.BlockSpec((k, n), lambda i: (0, 0)),
                pl.BlockSpec((1, n), lambda i: (0, 0)),
            ],
            out_specs=pl.BlockSpec((tm, n), lambda i: (i, 0)),
        ),
        compiler_params=pltpu.CompilerParams(
            dimension_semantics=("parallel",)),
        cost_estimate=cost,
    )(a, w, bias)


# -----------------------------------------------------------------------------
# Kernel 2: GEMM + bias + BatchNorm(batch stats) + LeakyReLU (layer2)
# -----------------------------------------------------------------------------
def _gemm_bn_lrelu_kernel(a_ref, w_ref, b_ref, g_ref, beta_ref, o_ref,
                          *, slope, eps):
    acc = jnp.dot(a_ref[...], w_ref[...], preferred_element_type=jnp.float32)
    acc = acc + b_ref[...]
    # training-mode BatchNorm: biased batch statistics, centered variance.
    mean = jnp.mean(acc, axis=0, keepdims=True)
    cen = acc - mean
    var = jnp.mean(cen * cen, axis=0, keepdims=True)
    scale = g_ref[...] * jax.lax.rsqrt(var + eps)
    v = cen * scale + beta_ref[...]
    o_ref[...] = jnp.maximum(v, slope * v).astype(o_ref.dtype)


def gemm_bn_lrelu(a, w, b, gamma, beta, *, out_dtype=jnp.bfloat16,
                  eps=BN_EPS, slope=LRELU_SLOPE):
    m, k = a.shape
    k2, n = w.shape
    assert k == k2
    cost = pl.CostEstimate(
        flops=2 * m * k * n + 10 * m * n,
        transcendentals=n,
        bytes_accessed=int(a.size * a.dtype.itemsize + w.size * w.dtype.itemsize
                           + m * n * jnp.dtype(out_dtype).itemsize),
    )
    return pl.pallas_call(
        functools.partial(_gemm_bn_lrelu_kernel, slope=slope, eps=eps),
        out_shape=jax.ShapeDtypeStruct((m, n), out_dtype),
        grid_spec=pltpu.PrefetchScalarGridSpec(
            num_scalar_prefetch=0,
            grid=(1,),
            in_specs=[
                pl.BlockSpec((m, k), lambda i: (0, 0)),
                pl.BlockSpec((k, n), lambda i: (0, 0)),
                pl.BlockSpec((1, n), lambda i: (0, 0)),
                pl.BlockSpec((1, n), lambda i: (0, 0)),
                pl.BlockSpec((1, n), lambda i: (0, 0)),
            ],
            out_specs=pl.BlockSpec((m, n), lambda i: (0, 0)),
        ),
        compiler_params=pltpu.CompilerParams(
            dimension_semantics=("arbitrary",),
            vmem_limit_bytes=48 * 1024 * 1024),
        cost_estimate=cost,
    )(a, w,
      b.reshape(1, n).astype(jnp.float32),
      gamma.reshape(1, n).astype(jnp.float32),
      beta.reshape(1, n).astype(jnp.float32))


# -----------------------------------------------------------------------------
# Kernel 3: layer3 GEMM + bias + BN + LeakyReLU fused with dense Linear+Sigmoid
#   dense: logit[b] = sum_{i,c} h[b*9+i, c] * wd[i, c] + bd
#   implemented as per-row weighting followed by a selector matmul (9-row group
#   sum) and a lane reduction -> the layer3 activation never leaves VMEM.
# -----------------------------------------------------------------------------
def _gemm_bn_lrelu_dense_sigmoid_kernel(a_ref, w_ref, b_ref, g_ref, beta_ref,
                                        wd_ref, sel_ref, bd_ref, o_ref,
                                        *, slope, eps):
    acc = jnp.dot(a_ref[...], w_ref[...], preferred_element_type=jnp.float32)
    acc = acc + b_ref[...]
    mean = jnp.mean(acc, axis=0, keepdims=True)
    cen = acc - mean
    var = jnp.mean(cen * cen, axis=0, keepdims=True)
    scale = g_ref[...] * jax.lax.rsqrt(var + eps)
    v = cen * scale + beta_ref[...]
    h = jnp.maximum(v, slope * v)                                # (B*9, 128) f32
    weighted = h * wd_ref[...]                                   # (B*9, 128)
    grouped = jnp.dot(sel_ref[...], weighted,
                      preferred_element_type=jnp.float32)        # (B, 128)
    logit = jnp.sum(grouped, axis=-1, keepdims=True) + bd_ref[...]   # (B, 1)
    sig = pl.reciprocal(1.0 + jnp.exp(-logit), approx=True)
    o_ref[...] = jnp.broadcast_to(sig, o_ref.shape).astype(o_ref.dtype)


def conv3_bn_lrelu_dense_sigmoid(a, w, b, gamma, beta, wd_rows, sel, bd,
                                 *, eps=BN_EPS, slope=LRELU_SLOPE):
    m, k = a.shape
    k2, n = w.shape
    assert k == k2
    bsz = sel.shape[0]
    cost = pl.CostEstimate(
        flops=2 * m * k * n + 2 * bsz * m * n + 12 * m * n,
        transcendentals=n + bsz,
        bytes_accessed=int(a.size * a.dtype.itemsize + w.size * w.dtype.itemsize
                           + wd_rows.size * 4 + sel.size * 4 + bsz * 128 * 4),
    )
    return pl.pallas_call(
        functools.partial(_gemm_bn_lrelu_dense_sigmoid_kernel,
                          slope=slope, eps=eps),
        out_shape=jax.ShapeDtypeStruct((bsz, 128), jnp.float32),
        grid_spec=pltpu.PrefetchScalarGridSpec(
            num_scalar_prefetch=0,
            grid=(1,),
            in_specs=[
                pl.BlockSpec((m, k), lambda i: (0, 0)),
                pl.BlockSpec((k, n), lambda i: (0, 0)),
                pl.BlockSpec((1, n), lambda i: (0, 0)),
                pl.BlockSpec((1, n), lambda i: (0, 0)),
                pl.BlockSpec((1, n), lambda i: (0, 0)),
                pl.BlockSpec((m, n), lambda i: (0, 0)),
                pl.BlockSpec((bsz, m), lambda i: (0, 0)),
                pl.BlockSpec((1, 1), lambda i: (0, 0)),
            ],
            out_specs=pl.BlockSpec((bsz, 128), lambda i: (0, 0)),
        ),
        compiler_params=pltpu.CompilerParams(
            dimension_semantics=("arbitrary",),
            vmem_limit_bytes=48 * 1024 * 1024),
        cost_estimate=cost,
    )(a, w,
      b.reshape(1, n).astype(jnp.float32),
      gamma.reshape(1, n).astype(jnp.float32),
      beta.reshape(1, n).astype(jnp.float32),
      wd_rows.astype(jnp.float32), sel.astype(jnp.float32),
      bd.reshape(1, 1).astype(jnp.float32))


# -----------------------------------------------------------------------------
# Discriminator_num equivalent
# -----------------------------------------------------------------------------
class DiscriminatorNumPallas:
    def __init__(self, key):
        ks = jax.random.split(key, 9)
        std = 0.05

        # nn.Parameter(torch.randn(1, 1, 28, 28))
        self.img_weight = jax.random.normal(ks[0], (1, 1, 28, 28), jnp.float32)

        # layer1: Conv2d(2, 64, 3, s2, p1) + LeakyReLU
        w1 = jax.random.normal(ks[1], (64, 2, 3, 3), jnp.float32) * std
        self.b1 = jax.random.normal(ks[2], (64,), jnp.float32) * std
        self.w1_mat = _conv_w_to_mat(w1)                          # (18, 64) f32

        # layer2: Conv2d(64, 64, 3, s2, p1) + BN(64) + LeakyReLU
        w2 = jax.random.normal(ks[3], (64, 64, 3, 3), jnp.float32) * std
        self.b2 = jax.random.normal(ks[4], (64,), jnp.float32) * std
        self.w2_mat = _conv_w_to_mat(w2).astype(jnp.bfloat16)     # (576, 64)
        self.g2 = jnp.ones((64,), jnp.float32)
        self.be2 = jnp.zeros((64,), jnp.float32)

        # layer3: Conv2d(64, 128, 3, s2, p0) + BN(128) + LeakyReLU
        w3 = jax.random.normal(ks[5], (128, 64, 3, 3), jnp.float32) * std
        self.b3 = jax.random.normal(ks[6], (128,), jnp.float32) * std
        self.w3_mat = _conv_w_to_mat(w3).astype(jnp.bfloat16)     # (576, 128)
        self.g3 = jnp.ones((128,), jnp.float32)
        self.be3 = jnp.zeros((128,), jnp.float32)

        # dense: Linear(3*3*128, 1) + Sigmoid.  PyTorch flattens NCHW (c,h,w);
        # our layer3 rows are (b, ho, wo) with channels in lanes, so reorder
        # the weight to wd9[h*3+w, c] = Wd[0, c*9 + h*3 + w].
        wd = jax.random.normal(ks[7], (1, 3 * 3 * 128), jnp.float32) * std
        self.wd9 = wd.reshape(128, 3, 3).transpose(1, 2, 0).reshape(9, 128)
        self.bd = jax.random.normal(ks[8], (1,), jnp.float32) * std

    def __call__(self, x_nchw):
        B = x_nchw.shape[0]

        # torch.cat([x, weight.repeat(B,1,1,1)], dim=1) -> NHWC (B,28,28,2)
        x = jnp.transpose(x_nchw, (0, 2, 3, 1))                   # (B,28,28,1)
        w_img = jnp.transpose(self.img_weight, (0, 2, 3, 1))      # (1,28,28,1)
        w_img = jnp.broadcast_to(w_img, (B, 28, 28, 1))
        h = jnp.concatenate([x, w_img], axis=-1)                  # (B,28,28,2)

        # layer1: Conv(2->64, s2, p1) + LeakyReLU            -> bf16 (B,14,14,64)
        a, (_, Ho, Wo) = _im2col(h, 3, 2, 1)                      # (B*196, 18) f32
        y = gemm_bias_lrelu(a, self.w1_mat, self.b1)
        h = y.reshape(B, Ho, Wo, 64)

        # layer2: Conv(64->64, s2, p1) + BN + LeakyReLU      -> bf16 (B,7,7,64)
        a, (_, Ho, Wo) = _im2col(h, 3, 2, 1)                      # (B*49, 576) bf16
        y = gemm_bn_lrelu(a, self.w2_mat, self.b2, self.g2, self.be2)
        h = y.reshape(B, Ho, Wo, 64)

        # layer3 + dense: Conv(64->128, s2, p0)+BN+LeakyReLU, Flatten,
        # Linear(1152,1), Sigmoid — all fused in one kernel   -> (B, 128)
        a, (_, Ho, Wo) = _im2col(h, 3, 2, 0)                      # (B*9, 576) bf16
        wd_rows = jnp.tile(self.wd9, (B, 1))                      # (B*9, 128)
        sel = jnp.repeat(jnp.eye(B, dtype=jnp.float32), Ho * Wo, axis=1)  # (B, B*9)
        y = conv3_bn_lrelu_dense_sigmoid(a, self.w3_mat, self.b3,
                                         self.g3, self.be3,
                                         wd_rows, sel, self.bd)
        return y[:, :1]                                           # (B, 1)


if __name__ == "__main__":
    key = jax.random.PRNGKey(0)
    param_key, x_key = jax.random.split(key)
    model = DiscriminatorNumPallas(param_key)

    batch_size = 2
    x = jax.random.normal(x_key, (batch_size, 1, 28, 28), jnp.float32)

    fwd = jax.jit(lambda xx: model(xx))
    out = jax.block_until_ready(fwd(x))

    assert out.shape == (batch_size, 1), out.shape
    assert out.dtype == jnp.float32
    assert bool(jnp.all(jnp.isfinite(out)))
    assert bool(jnp.all((out >= 0.0) & (out <= 1.0)))   # sigmoid output range
    print("KERNEL_OK")
</pallas_src>

<mosaic_0001>
module attributes {stable_mosaic.version = 11 : i64} {
  func.func @_gemm_bias_lrelu_kernel(%arg0: i32, %arg1: memref<392x18xf32, #tpu.memory_space<vmem>>, %arg2: memref<18x64xf32, #tpu.memory_space<vmem>>, %arg3: memref<1x64xf32, #tpu.memory_space<vmem>>, %arg4: memref<392x64xbf16, #tpu.memory_space<vmem>>) attributes {dimension_semantics = [#tpu.dimension_semantics<parallel>], iteration_bounds = array<i64: 1>, scalar_prefetch = 0 : i64, scratch_operands = 0 : i64, tpu.core_type = #tpu.core_type<tc>, window_params = [{transform_indices = @transform_0, window_bounds = array<i64: 392, 18>}, {pipeline_mode = #tpu.pipeline_mode<synchronous>, transform_indices = @transform_1, window_bounds = array<i64: 18, 64>}, {pipeline_mode = #tpu.pipeline_mode<synchronous>, transform_indices = @transform_2, window_bounds = array<i64: 1, 64>}, {transform_indices = @transform_3, window_bounds = array<i64: 392, 64>}]} {
    %c0 = arith.constant 0 : index
    %c0_0 = arith.constant 0 : index
    %0 = vector.load %arg1[%c0, %c0_0] : memref<392x18xf32, #tpu.memory_space<vmem>>, vector<392x18xf32>
    %c0_1 = arith.constant 0 : index
    %c0_2 = arith.constant 0 : index
    %1 = vector.load %arg2[%c0_1, %c0_2] : memref<18x64xf32, #tpu.memory_space<vmem>>, vector<18x64xf32>
    %cst = arith.constant dense<0.000000e+00> : vector<392x64xf32>
    %2 = tpu.matmul %0, %1, %cst {dimension_numbers = #tpu.dot_dimension_numbers<[1], [0], [0], [1], [0, 0, 1, 1], [], []>} : vector<392x18xf32>, vector<18x64xf32>, vector<392x64xf32> -> vector<392x64xf32>
    %c0_3 = arith.constant 0 : index
    %c0_4 = arith.constant 0 : index
    %3 = vector.load %arg3[%c0_3, %c0_4] : memref<1x64xf32, #tpu.memory_space<vmem>>, vector<1x64xf32>
    %4 = vector.broadcast %3 : vector<1x64xf32> to vector<392x64xf32>
    %5 = arith.addf %2, %4 : vector<392x64xf32>
    %cst_5 = arith.constant 0.00999999977 : f32
    %6 = vector.broadcast %cst_5 : f32 to vector<392x64xf32>
    %7 = arith.mulf %6, %5 : vector<392x64xf32>
    %8 = arith.maximumf %5, %7 : vector<392x64xf32>
    %9 = arith.truncf %8 : vector<392x64xf32> to vector<392x64xbf16>
    %c0_6 = arith.constant 0 : index
    %c0_7 = arith.constant 0 : index
    %10 = vector.load %arg4[%c0_6, %c0_7] : memref<392x64xbf16, #tpu.memory_space<vmem>>, vector<392x64xbf16>
    tpu.vector_store %arg4[%c0_6, %c0_7], %9 {strides = array<i32>} : memref<392x64xbf16, #tpu.memory_space<vmem>>, vector<392x64xbf16>,
    return
  }
  func.func @transform_0(%arg0: i32) -> (i32, i32) {
    %c0_i32 = arith.constant 0 : i32
    %c0_i32_0 = arith.constant 0 : i32
    return %arg0, %c0_i32 : i32, i32
  }
  func.func @transform_1(%arg0: i32) -> (i32, i32) {
    %c0_i32 = arith.constant 0 : i32
    %c0_i32_0 = arith.constant 0 : i32
    %c0_i32_1 = arith.constant 0 : i32
    return %c0_i32, %c0_i32_0 : i32, i32
  }
  func.func @transform_2(%arg0: i32) -> (i32, i32) {
    %c0_i32 = arith.constant 0 : i32
    %c0_i32_0 = arith.constant 0 : i32
    %c0_i32_1 = arith.constant 0 : i32
    return %c0_i32, %c0_i32_0 : i32, i32
  }
  func.func @transform_3(%arg0: i32) -> (i32, i32) {
    %c0_i32 = arith.constant 0 : i32
    %c0_i32_0 = arith.constant 0 : i32
    return %arg0, %c0_i32 : i32, i32
  }
}

module attributes {stable_mosaic.version = 11 : i64} {
  func.func @_gemm_bn_lrelu_kernel(%arg0: i32, %arg1: memref<98x576xbf16, #tpu.memory_space<vmem>>, %arg2: memref<576x64xbf16, #tpu.memory_space<vmem>>, %arg3: memref<1x64xf32, #tpu.memory_space<vmem>>, %arg4: memref<1x64xf32, #tpu.memory_space<vmem>>, %arg5: memref<1x64xf32, #tpu.memory_space<vmem>>, %arg6: memref<98x64xbf16, #tpu.memory_space<vmem>>) attributes {dimension_semantics = [#tpu.dimension_semantics<arbitrary>], iteration_bounds = array<i64: 1>, scalar_prefetch = 0 : i64, scratch_operands = 0 : i64, tpu.core_type = #tpu.core_type<tc>, window_params = [{pipeline_mode = #tpu.pipeline_mode<synchronous>, transform_indices = @transform_0, window_bounds = array<i64: 98, 576>}, {pipeline_mode = #tpu.pipeline_mode<synchronous>, transform_indices = @transform_1, window_bounds = array<i64: 576, 64>}, {pipeline_mode = #tpu.pipeline_mode<synchronous>, transform_indices = @transform_2, window_bounds = array<i64: 1, 64>}, {pipeline_mode = #tpu.pipeline_mode<synchronous>, transform_indices = @transform_3, window_bounds = array<i64: 1, 64>}, {pipeline_mode = #tpu.pipeline_mode<synchronous>, transform_indices = @transform_4, window_bounds = array<i64: 1, 64>}, {pipeline_mode = #tpu.pipeline_mode<synchronous>, transform_indices = @transform_5, window_bounds = array<i64: 98, 64>}]} {
    %c0 = arith.constant 0 : index
    %c0_0 = arith.constant 0 : index
    %0 = vector.load %arg1[%c0, %c0_0] : memref<98x576xbf16, #tpu.memory_space<vmem>>, vector<98x576xbf16>
    %c0_1 = arith.constant 0 : index
    %c0_2 = arith.constant 0 : index
    %1 = vector.load %arg2[%c0_1, %c0_2] : memref<576x64xbf16, #tpu.memory_space<vmem>>, vector<576x64xbf16>
    %cst = arith.constant dense<0.000000e+00> : vector<98x64xf32>
    %2 = tpu.matmul %0, %1, %cst {dimension_numbers = #tpu.dot_dimension_numbers<[1], [0], [0], [1], [0, 0, 1, 1], [], []>} : vector<98x576xbf16>, vector<576x64xbf16>, vector<98x64xf32> -> vector<98x64xf32>
    %c0_3 = arith.constant 0 : index
    %c0_4 = arith.constant 0 : index
    %3 = vector.load %arg3[%c0_3, %c0_4] : memref<1x64xf32, #tpu.memory_space<vmem>>, vector<1x64xf32>
    %4 = vector.broadcast %3 : vector<1x64xf32> to vector<98x64xf32>
    %5 = arith.addf %2, %4 : vector<98x64xf32>
    %cst_5 = arith.constant dense<0.000000e+00> : vector<64xf32>
    %6 = vector.multi_reduction <add>, %5, %cst_5 [0] : vector<98x64xf32> to vector<64xf32>
    %7 = vector.shape_cast %6 : vector<64xf32> to vector<1x64xf32>
    %cst_6 = arith.constant 9.800000e+01 : f32
    %8 = vector.broadcast %cst_6 : f32 to vector<1x64xf32>
    %9 = arith.divf %7, %8 : vector<1x64xf32>
    %10 = vector.broadcast %9 : vector<1x64xf32> to vector<98x64xf32>
    %11 = arith.subf %5, %10 : vector<98x64xf32>
    %12 = arith.mulf %11, %11 : vector<98x64xf32>
    %cst_7 = arith.constant dense<0.000000e+00> : vector<64xf32>
    %13 = vector.multi_reduction <add>, %12, %cst_7 [0] : vector<98x64xf32> to vector<64xf32>
    %14 = vector.shape_cast %13 : vector<64xf32> to vector<1x64xf32>
    %cst_8 = arith.constant 9.800000e+01 : f32
    %15 = vector.broadcast %cst_8 : f32 to vector<1x64xf32>
    %16 = arith.divf %14, %15 : vector<1x64xf32>
    %c0_9 = arith.constant 0 : index
    %c0_10 = arith.constant 0 : index
    %17 = vector.load %arg4[%c0_9, %c0_10] : memref<1x64xf32, #tpu.memory_space<vmem>>, vector<1x64xf32>
    %cst_11 = arith.constant 9.99999974E-6 : f32
    %18 = vector.broadcast %cst_11 : f32 to vector<1x64xf32>
    %19 = arith.addf %16, %18 : vector<1x64xf32>
    %20 = math.rsqrt %19 : vector<1x64xf32>
    %21 = arith.mulf %17, %20 : vector<1x64xf32>
    %22 = vector.broadcast %21 : vector<1x64xf32> to vector<98x64xf32>
    %23 = arith.mulf %11, %22 : vector<98x64xf32>
    %c0_12 = arith.constant 0 : index
    %c0_13 = arith.constant 0 : index
    %24 = vector.load %arg5[%c0_12, %c0_13] : memref<1x64xf32, #tpu.memory_space<vmem>>, vector<1x64xf32>
    %25 = vector.broadcast %24 : vector<1x64xf32> to vector<98x64xf32>
    %26 = arith.addf %23, %25 : vector<98x64xf32>
    %cst_14 = arith.constant 0.00999999977 : f32
    %27 = vector.broadcast %cst_14 : f32 to vector<98x64xf32>
    %28 = arith.mulf %27, %26 : vector<98x64xf32>
    %29 = arith.maximumf %26, %28 : vector<98x64xf32>
    %30 = arith.truncf %29 : vector<98x64xf32> to vector<98x64xbf16>
    %c0_15 = arith.constant 0 : index
    %c0_16 = arith.constant 0 : index
    %31 = vector.load %arg6[%c0_15, %c0_16] : memref<98x64xbf16, #tpu.memory_space<vmem>>, vector<98x64xbf16>
    tpu.vector_store %arg6[%c0_15, %c0_16], %30 {strides = array<i32>} : memref<98x64xbf16, #tpu.memory_space<vmem>>, vector<98x64xbf16>,
    return
  }
  func.func @transform_0(%arg0: i32) -> (i32, i32) {
    %c0_i32 = arith.constant 0 : i32
    %c0_i32_0 = arith.constant 0 : i32
    %c0_i32_1 = arith.constant 0 : i32
    return %c0_i32, %c0_i32_0 : i32, i32
  }
  func.func @transform_1(%arg0: i32) -> (i32, i32) {
    %c0_i32 = arith.constant 0 : i32
    %c0_i32_0 = arith.constant 0 : i32
    %c0_i32_1 = arith.constant 0 : i32
    return %c0_i32, %c0_i32_0 : i32, i32
  }
  func.func @transform_2(%arg0: i32) -> (i32, i32) {
    %c0_i32 = arith.constant 0 : i32
    %c0_i32_0 = arith.constant 0 : i32
    %c0_i32_1 = arith.constant 0 : i32
    return %c0_i32, %c0_i32_0 : i32, i32
  }
  func.func @transform_3(%arg0: i32) -> (i32, i32) {
    %c0_i32 = arith.constant 0 : i32
    %c0_i32_0 = arith.constant 0 : i32
    %c0_i32_1 = arith.constant 0 : i32
    return %c0_i32, %c0_i32_0 : i32, i32
  }
  func.func @transform_4(%arg0: i32) -> (i32, i32) {
    %c0_i32 = arith.constant 0 : i32
    %c0_i32_0 = arith.constant 0 : i32
    %c0_i32_1 = arith.constant 0 : i32
    return %c0_i32, %c0_i32_0 : i32, i32
  }
  func.func @transform_5(%arg0: i32) -> (i32, i32) {
    %c0_i32 = arith.constant 0 : i32
    %c0_i32_0 = arith.constant 0 : i32
    %c0_i32_1 = arith.constant 0 : i32
    return %c0_i32, %c0_i32_0 : i32, i32
  }
}

module attributes {stable_mosaic.version = 11 : i64} {
  func.func @_gemm_bn_lrelu_dense_sigmoid_kernel(%arg0: i32, %arg1: memref<18x576xbf16, #tpu.memory_space<vmem>>, %arg2: memref<576x128xbf16, #tpu.memory_space<vmem>>, %arg3: memref<1x128xf32, #tpu.memory_space<vmem>>, %arg4: memref<1x128xf32, #tpu.memory_space<vmem>>, %arg5: memref<1x128xf32, #tpu.memory_space<vmem>>, %arg6: memref<18x128xf32, #tpu.memory_space<vmem>>, %arg7: memref<2x18xf32, #tpu.memory_space<vmem>>, %arg8: memref<1x1xf32, #tpu.memory_space<vmem>>, %arg9: memref<2x128xf32, #tpu.memory_space<vmem>>) attributes {dimension_semantics = [#tpu.dimension_semantics<arbitrary>], iteration_bounds = array<i64: 1>, scalar_prefetch = 0 : i64, scratch_operands = 0 : i64, tpu.core_type = #tpu.core_type<tc>, window_params = [{pipeline_mode = #tpu.pipeline_mode<synchronous>, transform_indices = @transform_0, window_bounds = array<i64: 18, 576>}, {pipeline_mode = #tpu.pipeline_mode<synchronous>, transform_indices = @transform_1, window_bounds = array<i64: 576, 128>}, {pipeline_mode = #tpu.pipeline_mode<synchronous>, transform_indices = @transform_2, window_bounds = array<i64: 1, 128>}, {pipeline_mode = #tpu.pipeline_mode<synchronous>, transform_indices = @transform_3, window_bounds = array<i64: 1, 128>}, {pipeline_mode = #tpu.pipeline_mode<synchronous>, transform_indices = @transform_4, window_bounds = array<i64: 1, 128>}, {pipeline_mode = #tpu.pipeline_mode<synchronous>, transform_indices = @transform_5, window_bounds = array<i64: 18, 128>}, {pipeline_mode = #tpu.pipeline_mode<synchronous>, transform_indices = @transform_6, window_bounds = array<i64: 2, 18>}, {pipeline_mode = #tpu.pipeline_mode<synchronous>, transform_indices = @transform_7, window_bounds = array<i64: 1, 1>}, {pipeline_mode = #tpu.pipeline_mode<synchronous>, transform_indices = @transform_8, window_bounds = array<i64: 2, 128>}]} {
    %c0 = arith.constant 0 : index
    %c0_0 = arith.constant 0 : index
    %0 = vector.load %arg1[%c0, %c0_0] : memref<18x576xbf16, #tpu.memory_space<vmem>>, vector<18x576xbf16>
    %c0_1 = arith.constant 0 : index
    %c0_2 = arith.constant 0 : index
    %1 = vector.load %arg2[%c0_1, %c0_2] : memref<576x128xbf16, #tpu.memory_space<vmem>>, vector<576x128xbf16>
    %cst = arith.constant dense<0.000000e+00> : vector<18x128xf32>
    %2 = tpu.matmul %0, %1, %cst {dimension_numbers = #tpu.dot_dimension_numbers<[1], [0], [0], [1], [0, 0, 1, 1], [], []>} : vector<18x576xbf16>, vector<576x128xbf16>, vector<18x128xf32> -> vector<18x128xf32>
    %c0_3 = arith.constant 0 : index
    %c0_4 = arith.constant 0 : index
    %3 = vector.load %arg3[%c0_3, %c0_4] : memref<1x128xf32, #tpu.memory_space<vmem>>, vector<1x128xf32>
    %4 = vector.broadcast %3 : vector<1x128xf32> to vector<18x128xf32>
    %5 = arith.addf %2, %4 : vector<18x128xf32>
    %cst_5 = arith.constant dense<0.000000e+00> : vector<128xf32>
    %6 = vector.multi_reduction <add>, %5, %cst_5 [0] : vector<18x128xf32> to vector<128xf32>
    %7 = vector.shape_cast %6 : vector<128xf32> to vector<1x128xf32>
    %cst_6 = arith.constant 1.800000e+01 : f32
    %8 = vector.broadcast %cst_6 : f32 to vector<1x128xf32>
    %9 = arith.divf %7, %8 : vector<1x128xf32>
    %10 = vector.broadcast %9 : vector<1x128xf32> to vector<18x128xf32>
    %11 = arith.subf %5, %10 : vector<18x128xf32>
    %12 = arith.mulf %11, %11 : vector<18x128xf32>
    %cst_7 = arith.constant dense<0.000000e+00> : vector<128xf32>
    %13 = vector.multi_reduction <add>, %12, %cst_7 [0] : vector<18x128xf32> to vector<128xf32>
    %14 = vector.shape_cast %13 : vector<128xf32> to vector<1x128xf32>
    %cst_8 = arith.constant 1.800000e+01 : f32
    %15 = vector.broadcast %cst_8 : f32 to vector<1x128xf32>
    %16 = arith.divf %14, %15 : vector<1x128xf32>
    %c0_9 = arith.constant 0 : index
    %c0_10 = arith.constant 0 : index
    %17 = vector.load %arg4[%c0_9, %c0_10] : memref<1x128xf32, #tpu.memory_space<vmem>>, vector<1x128xf32>
    %cst_11 = arith.constant 9.99999974E-6 : f32
    %18 = vector.broadcast %cst_11 : f32 to vector<1x128xf32>
    %19 = arith.addf %16, %18 : vector<1x128xf32>
    %20 = math.rsqrt %19 : vector<1x128xf32>
    %21 = arith.mulf %17, %20 : vector<1x128xf32>
    %22 = vector.broadcast %21 : vector<1x128xf32> to vector<18x128xf32>
    %23 = arith.mulf %11, %22 : vector<18x128xf32>
    %c0_12 = arith.constant 0 : index
    %c0_13 = arith.constant 0 : index
    %24 = vector.load %arg5[%c0_12, %c0_13] : memref<1x128xf32, #tpu.memory_space<vmem>>, vector<1x128xf32>
    %25 = vector.broadcast %24 : vector<1x128xf32> to vector<18x128xf32>
    %26 = arith.addf %23, %25 : vector<18x128xf32>
    %cst_14 = arith.constant 0.00999999977 : f32
    %27 = vector.broadcast %cst_14 : f32 to vector<18x128xf32>
    %28 = arith.mulf %27, %26 : vector<18x128xf32>
    %29 = arith.maximumf %26, %28 : vector<18x128xf32>
    %c0_15 = arith.constant 0 : index
    %c0_16 = arith.constant 0 : index
    %30 = vector.load %arg6[%c0_15, %c0_16] : memref<18x128xf32, #tpu.memory_space<vmem>>, vector<18x128xf32>
    %31 = arith.mulf %29, %30 : vector<18x128xf32>
    %c0_17 = arith.constant 0 : index
    %c0_18 = arith.constant 0 : index
    %32 = vector.load %arg7[%c0_17, %c0_18] : memref<2x18xf32, #tpu.memory_space<vmem>>, vector<2x18xf32>
    %cst_19 = arith.constant dense<0.000000e+00> : vector<2x128xf32>
    %33 = tpu.matmul %32, %31, %cst_19 {dimension_numbers = #tpu.dot_dimension_numbers<[1], [0], [0], [1], [0, 0, 1, 1], [], []>} : vector<2x18xf32>, vector<18x128xf32>, vector<2x128xf32> -> vector<2x128xf32>
    %cst_20 = arith.constant dense<0.000000e+00> : vector<2xf32>
    %34 = vector.multi_reduction <add>, %33, %cst_20 [1] : vector<2x128xf32> to vector<2xf32>
    %35 = vector.shape_cast %34 : vector<2xf32> to vector<2x1xf32>
    %c0_21 = arith.constant 0 : index
    %c0_22 = arith.constant 0 : index
    %36 = vector.load %arg8[%c0_21, %c0_22] : memref<1x1xf32, #tpu.memory_space<vmem>>, vector<1x1xf32>
    %37 = vector.broadcast %36 : vector<1x1xf32> to vector<2x1xf32>
    %38 = arith.addf %35, %37 : vector<2x1xf32>
    %cst_23 = arith.constant 0.000000e+00 : f32
    %39 = vector.broadcast %cst_23 : f32 to vector<2x1xf32>
    %40 = arith.subf %39, %38 : vector<2x1xf32>
    %41 = math.exp %40 : vector<2x1xf32>
    %cst_24 = arith.constant 1.000000e+00 : f32
    %42 = vector.broadcast %cst_24 : f32 to vector<2x1xf32>
    %43 = arith.addf %42, %41 : vector<2x1xf32>
    %44 = tpu.reciprocal %43 {approx = true} : vector<2x1xf32> -> vector<2x1xf32>
    %45 = vector.shape_cast %44 : vector<2x1xf32> to vector<2x1xf32>
    %46 = vector.broadcast %45 : vector<2x1xf32> to vector<2x128xf32>
    %c0_25 = arith.constant 0 : index
    %c0_26 = arith.constant 0 : index
    %47 = vector.load %arg9[%c0_25, %c0_26] : memref<2x128xf32, #tpu.memory_space<vmem>>, vector<2x128xf32>
    tpu.vector_store %arg9[%c0_25, %c0_26], %46 {strides = array<i32>} : memref<2x128xf32, #tpu.memory_space<vmem>>, vector<2x128xf32>,
    return
  }
  func.func @transform_0(%arg0: i32) -> (i32, i32) {
    %c0_i32 = arith.constant 0 : i32
    %c0_i32_0 = arith.constant 0 : i32
    %c0_i32_1 = arith.constant 0 : i32
    return %c0_i32, %c0_i32_0 : i32, i32
  }
  func.func @transform_1(%arg0: i32) -> (i32, i32) {
    %c0_i32 = arith.constant 0 : i32
    %c0_i32_0 = arith.constant 0 : i32
    %c0_i32_1 = arith.constant 0 : i32
    return %c0_i32, %c0_i32_0 : i32, i32
  }
  func.func @transform_2(%arg0: i32) -> (i32, i32) {
    %c0_i32 = arith.constant 0 : i32
    %c0_i32_0 = arith.constant 0 : i32
    %c0_i32_1 = arith.constant 0 : i32
    return %c0_i32, %c0_i32_0 : i32, i32
  }
  func.func @transform_3(%arg0: i32) -> (i32, i32) {
    %c0_i32 = arith.constant 0 : i32
    %c0_i32_0 = arith.constant 0 : i32
    %c0_i32_1 = arith.constant 0 : i32
    return %c0_i32, %c0_i32_0 : i32, i32
  }
  func.func @transform_4(%arg0: i32) -> (i32, i32) {
    %c0_i32 = arith.constant 0 : i32
    %c0_i32_0 = arith.constant 0 : i32
    %c0_i32_1 = arith.constant 0 : i32
    return %c0_i32, %c0_i32_0 : i32, i32
  }
  func.func @transform_5(%arg0: i32) -> (i32, i32) {
    %c0_i32 = arith.constant 0 : i32
    %c0_i32_0 = arith.constant 0 : i32
    %c0_i32_1 = arith.constant 0 : i32
    return %c0_i32, %c0_i32_0 : i32, i32
  }
  func.func @transform_6(%arg0: i32) -> (i32, i32) {
    %c0_i32 = arith.constant 0 : i32
    %c0_i32_0 = arith.constant 0 : i32
    %c0_i32_1 = arith.constant 0 : i32
    return %c0_i32, %c0_i32_0 : i32, i32
  }
  func.func @transform_7(%arg0: i32) -> (i32, i32) {
    %c0_i32 = arith.constant 0 : i32
    %c0_i32_0 = arith.constant 0 : i32
    %c0_i32_1 = arith.constant 0 : i32
    return %c0_i32, %c0_i32_0 : i32, i32
  }
  func.func @transform_8(%arg0: i32) -> (i32, i32) {
    %c0_i32 = arith.constant 0 : i32
    %c0_i32_0 = arith.constant 0 : i32
    %c0_i32_1 = arith.constant 0 : i32
    return %c0_i32, %c0_i32_0 : i32, i32
  }
}

</mosaic_0001>

<llo_original>
// kernel: _lambda_.3
$region0: #{_lambda_.3}
  #allocation0 [shape = 'u32[]', space=smem, size = 0x4, offset = 0x4, fixed_abs, tag = 'smem constant byte address 0x4 - core index']
  #allocation1 [shape = 'u32[144,128]{1,0:T(1,128)}', space=vmem, size = 0x12000, scoped, tag = 'internal scratch']
  %s0 = inlined_call_operand.vmem [shape: f32[392,18], index: 0, kind: input, shape index: {}]
  %s1 = inlined_call_operand.vmem [shape: f32[18,64], index: 1, kind: input, shape index: {}]
  %s2 = inlined_call_operand.vmem [shape: f32[1,64], index: 2, kind: input, shape index: {}]
  %s3 = inlined_call_operand.vmem [shape: bf16[392,64], index: 3, kind: output, shape index: {}]
  %s4 = sld [smem:[#allocation0]]
  $region22: #{_lambda_.3} parent=0
    _
  %s6 = ssub.s32 1, %s4
  %s7 = scalar_select 0, %s6, %s4
  // Predicated region
  $region2: #{_lambda_.3} parent=0 // pred_check
    _
  $region3: #{_lambda_.3} parent=0 // pred_check_branch
    %9 = sbr.rel (0) target = $region5
  $region4: #{_lambda_.3} parent=0 // pred_region
    _
  $region5: #{_lambda_.3} parent=0 // pred_fallthru
    _
  // Predicated region
  $region6: #{_lambda_.3} parent=0 // pred_check
    _
  $region7: #{_lambda_.3} parent=0 // pred_check_branch
    %11 = sbr.rel (0) target = $region9
  $region8: #{_lambda_.3} parent=0 // pred_region
    _
  $region9: #{_lambda_.3} parent=0 // pred_fallthru
    _
  // Predicated region
  $region10: #{_lambda_.3} parent=0 // pred_check
    _
  $region11: #{_lambda_.3} parent=0 // pred_check_branch
    %13 = sbr.rel (0) target = $region13
  $region12: #{_lambda_.3} parent=0 // pred_region
    _
  $region13: #{_lambda_.3} parent=0 // pred_fallthru
    _
  %v14 = vld [vmem:[%s0] sm:$0xff]
  %v15 = vld [vmem:[%s0 + $0x8] sm:$0xff]
  %v16 = vld [vmem:[%s0 + $0x10] sm:$0xff]
  %v17 = vld [vmem:[%s0 + $0x18] sm:$0xff]
  %v18 = vld [vmem:[%s0 + $0x20] sm:$0xff]
  %v19 = vld [vmem:[%s0 + $0x28] sm:$0xff]
  %v20 = vld [vmem:[%s0 + $0x30] sm:$0xff]
  %v21 = vld [vmem:[%s0 + $0x38] sm:$0xff]
  %v22 = vld [vmem:[%s0 + $0x40] sm:$0xff]
  %v23 = vld [vmem:[%s0 + $0x48] sm:$0xff]
  %v24 = vld [vmem:[%s0 + $0x50] sm:$0xff]
  %v25 = vld [vmem:[%s0 + $0x58] sm:$0xff]
  %v26 = vld [vmem:[%s0 + $0x60] sm:$0xff]
  %v27 = vld [vmem:[%s0 + $0x68] sm:$0xff]
  %v28 = vld [vmem:[%s0 + $0x70] sm:$0xff]
  %v29 = vld [vmem:[%s0 + $0x78] sm:$0xff]
  %v30 = vld [vmem:[%s0 + $0x80] sm:$0xff]
  %v31 = vld [vmem:[%s0 + $0x88] sm:$0xff]
  %v32 = vld [vmem:[%s0 + $0x90] sm:$0xff]
  %v33 = vld [vmem:[%s0 + $0x98] sm:$0xff]
  %v34 = vld [vmem:[%s0 + $0xa0] sm:$0xff]
  %v35 = vld [vmem:[%s0 + $0xa8] sm:$0xff]
  %v36 = vld [vmem:[%s0 + $0xb0] sm:$0xff]
  %v37 = vld [vmem:[%s0 + $0xb8] sm:$0xff]
  %v38 = vld [vmem:[%s0 + $0xc0] sm:$0xff]
  %v39 = vld [vmem:[%s0 + $0xc8] sm:$0xff]
  %v40 = vld [vmem:[%s0 + $0xd0] sm:$0xff]
  %v41 = vld [vmem:[%s0 + $0xd8] sm:$0xff]
  %v42 = vld [vmem:[%s0 + $0xe0] sm:$0xff]
  %v43 = vld [vmem:[%s0 + $0xe8] sm:$0xff]
  %v44 = vld [vmem:[%s0 + $0xf0] sm:$0xff]
  %v45 = vld [vmem:[%s0 + $0xf8] sm:$0xff]
  %v46 = vld [vmem:[%s0 + $0x100] sm:$0xff]
  %v47 = vld [vmem:[%s0 + $0x108] sm:$0xff]
  %v48 = vld [vmem:[%s0 + $0x110] sm:$0xff]
  %v49 = vld [vmem:[%s0 + $0x118] sm:$0xff]
  %v50 = vld [vmem:[%s0 + $0x120] sm:$0xff]
  %v51 = vld [vmem:[%s0 + $0x128] sm:$0xff]
  %v52 = vld [vmem:[%s0 + $0x130] sm:$0xff]
  %v53 = vld [vmem:[%s0 + $0x138] sm:$0xff]
  %v54 = vld [vmem:[%s0 + $0x140] sm:$0xff]
  %v55 = vld [vmem:[%s0 + $0x148] sm:$0xff]
  %v56 = vld [vmem:[%s0 + $0x150] sm:$0xff]
  %v57 = vld [vmem:[%s0 + $0x158] sm:$0xff]
  %v58 = vld [vmem:[%s0 + $0x160] sm:$0xff]
  %v59 = vld [vmem:[%s0 + $0x168] sm:$0xff]
  %v60 = vld [vmem:[%s0 + $0x170] sm:$0xff]
  %v61 = vld [vmem:[%s0 + $0x178] sm:$0xff]
  %v62 = vld [vmem:[%s0 + $0x180] sm:$0xff]
  %v63 = vld [vmem:[%s1] sm:$0xff]
  %v64 = vld [vmem:[%s1 + $0x8] sm:$0xff]
  %v65 = vld [vmem:[%s1 + $0x10] sm:$0x3]
  %v66 = vld [vmem:[%s2] sm:$0x1]
  %v68 = vlaneseq
  %v69 = vshrl.u32 %v68, 7
  %v70 = vsub.s32 0, %v69
  %v71 = vrot.slane %v66, %v70
  %vm73 = vcmask 146432
  %v75 = vsel %vm73, %v14, 0
  %v78 = vsel %vm73, %v15, 0
  %v81 = vsel %vm73, %v16, 0
  %v84 = vsel %vm73, %v17, 0
  %v87 = vsel %vm73, %v18, 0
  %v90 = vsel %vm73, %v19, 0
  %v93 = vsel %vm73, %v20, 0
  %v96 = vsel %vm73, %v21, 0
  %v99 = vsel %vm73, %v22, 0
  %v102 = vsel %vm73, %v23, 0
  %v105 = vsel %vm73, %v24, 0
  %v108 = vsel %vm73, %v25, 0
  %v111 = vsel %vm73, %v26, 0
  %v114 = vsel %vm73, %v27, 0
  %v117 = vsel %vm73, %v28, 0
  %v120 = vsel %vm73, %v29, 0
  %v123 = vsel %vm73, %v30, 0
  %v126 = vsel %vm73, %v31, 0
  %v129 = vsel %vm73, %v32, 0
  %v132 = vsel %vm73, %v33, 0
  %v135 = vsel %vm73, %v34, 0
  %v138 = vsel %vm73, %v35, 0
  %v141 = vsel %vm73, %v36, 0
  %v144 = vsel %vm73, %v37, 0
  %v147 = vsel %vm73, %v38, 0
  %v150 = vsel %vm73, %v39, 0
  %v153 = vsel %vm73, %v40, 0
  %v156 = vsel %vm73, %v41, 0
  %v159 = vsel %vm73, %v42, 0
  %v162 = vsel %vm73, %v43, 0
  %v165 = vsel %vm73, %v44, 0
  %v168 = vsel %vm73, %v45, 0
  %v171 = vsel %vm73, %v46, 0
  %v174 = vsel %vm73, %v47, 0
  %v177 = vsel %vm73, %v48, 0
  %v180 = vsel %vm73, %v49, 0
  %v183 = vsel %vm73, %v50, 0
  %v186 = vsel %vm73, %v51, 0
  %v189 = vsel %vm73, %v52, 0
  %v192 = vsel %vm73, %v53, 0
  %v195 = vsel %vm73, %v54, 0
  %v198 = vsel %vm73, %v55, 0
  %v201 = vsel %vm73, %v56, 0
  %v204 = vsel %vm73, %v57, 0
  %v207 = vsel %vm73, %v58, 0
  %v210 = vsel %vm73, %v59, 0
  %v213 = vsel %vm73, %v60, 0
  %v216 = vsel %vm73, %v61, 0
  %v219 = vsel %vm73, %v62, 0
  %vm221 = vcmask 1041408
  %v223 = vsel %vm221, %v65, 0
  %225 = vmatprep.subr.mxu0 0.0
  %226 = vmatpush1.msra.mxu0 0.0
  %227 = vmatprep.subr.mxu0 0.0
  %228 = vmatpush1.msra.mxu0 0.0
  %229 = vmatprep.subr.mxu0 0.0
  %230 = vmatpush1.msra.mxu0 0.0
  %231 = vmatprep.subr.mxu0 0.0
  %232 = vmatpush1.msra.mxu0 0.0
  %233 = vmatprep.subr.mxu0 0.0
  %234 = vmatpush1.msra.mxu0 0.0
  %235 = vmatprep.subr.mxu0 0.0
  %236 = vmatpush1.msra.mxu0 0.0
  %237 = vmatprep.subr.mxu0 0.0
  %238 = vmatpush1.msra.mxu0 0.0
  %239 = vmatprep.subr.mxu0 0.0
  %240 = vmatpush1.msra.mxu0 0.0
  %241 = vmatprep.subr.mxu0 0.0
  %242 = vmatpush1.msra.mxu0 0.0
  %243 = vmatprep.subr.mxu0 0.0
  %244 = vmatpush1.msra.mxu0 0.0
  %245 = vmatprep.subr.mxu0 0.0
  %246 = vmatpush1.msra.mxu0 0.0
  %247 = vmatprep.subr.mxu0 0.0
  %248 = vmatpush1.msra.mxu0 0.0
  %249 = vmatprep.subr.mxu0 0.0
  %250 = vmatpush1.msra.mxu0 0.0
  %251 = vmatprep.subr.mxu0 0.0
  %252 = vmatpush1.msra.mxu0 %v223
  %253 = vmatprep.subr.mxu0 0.0
  %254 = vmatpush1.msra.mxu0 %v64
  %255 = vmatprep.subr.mxu0 0.0
  %256 = vmatpush1.msra.mxu0 %v63
  %257 = vmatprep.subr.mxu0 0.0
  %258 = vmatpush2.msra.mxu0 0.0
  %259 = vmatprep.subr.mxu0 0.0
  %260 = vmatpush2.msra.mxu0 0.0
  %261 = vmatprep.subr.mxu0 0.0
  %262 = vmatpush2.msra.mxu0 0.0
  %263 = vmatprep.subr.mxu0 0.0
  %264 = vmatpush2.msra.mxu0 0.0
  %265 = vmatprep.subr.mxu0 0.0
  %266 = vmatpush2.msra.mxu0 0.0
  %267 = vmatprep.subr.mxu0 0.0
  %268 = vmatpush2.msra.mxu0 0.0
  %269 = vmatprep.subr.mxu0 0.0
  %270 = vmatpush2.msra.mxu0 0.0
  %271 = vmatprep.subr.mxu0 0.0
  %272 = vmatpush2.msra.mxu0 0.0
  %273 = vmatprep.subr.mxu0 0.0
  %274 = vmatpush2.msra.mxu0 0.0
  %275 = vmatprep.subr.mxu0 0.0
  %276 = vmatpush2.msra.mxu0 0.0
  %277 = vmatprep.subr.mxu0 0.0
  %278 = vmatpush2.msra.mxu0 0.0
  %279 = vmatprep.subr.mxu0 0.0
  %280 = vmatpush2.msra.mxu0 0.0
  %281 = vmatprep.subr.mxu0 0.0
  %282 = vmatpush2.msra.mxu0 0.0
  %283 = vmatprep.subr.mxu0 0.0
  %284 = vmatpush2.msra.mxu0 0.0
  %285 = vmatprep.subr.mxu0 0.0
  %286 = vmatpush2.msra.mxu0 0.0
  %287 = vmatprep.subr.mxu0 0.0
  %288 = vmatpush2.msra.mxu0 0.0
  %289 = vmatprep.mubr.f32.mxu0 0.0
  %290 = vmatmul.mubr.f32.gmra.mxu0 %v75
  %v291 = vpop.f32.mrf.mxu0
  %v292 = vadd.f32 %v71, %v291
  %v293 = vpop.f32.mrf.mxu0
  %294 = vmatprep.mubr.f32.mxu0 0.0
  %295 = vmatmul.mubr.f32.gmra.mxu0 %v78
  %v296 = vpop.f32.mrf.mxu0
  %v297 = vadd.f32 %v71, %v296
  %v298 = vpop.f32.mrf.mxu0
  %299 = vmatprep.mubr.f32.mxu0 0.0
  %300 = vmatmul.mubr.f32.gmra.mxu0 %v81
  %v301 = vpop.f32.mrf.mxu0
  %v302 = vadd.f32 %v71, %v301
  %v303 = vpop.f32.mrf.mxu0
  %304 = vmatprep.mubr.f32.mxu0 0.0
  %305 = vmatmul.mubr.f32.gmra.mxu0 %v84
  %v306 = vpop.f32.mrf.mxu0
  %v307 = vadd.f32 %v71, %v306
  %v308 = vpop.f32.mrf.mxu0
  %309 = vmatprep.mubr.f32.mxu0 0.0
  %310 = vmatmul.mubr.f32.gmra.mxu0 %v87
  %v311 = vpop.f32.mrf.mxu0
  %v312 = vadd.f32 %v71, %v311
  %v313 = vpop.f32.mrf.mxu0
  %314 = vmatprep.mubr.f32.mxu0 0.0
  %315 = vmatmul.mubr.f32.gmra.mxu0 %v90
  %v316 = vpop.f32.mrf.mxu0
  %v317 = vadd.f32 %v71, %v316
  %v318 = vpop.f32.mrf.mxu0
  %319 = vmatprep.mubr.f32.mxu0 0.0
  %320 = vmatmul.mubr.f32.gmra.mxu0 %v93
  %v321 = vpop.f32.mrf.mxu0
  %v322 = vadd.f32 %v71, %v321
  %v323 = vpop.f32.mrf.mxu0
  %324 = vmatprep.mubr.f32.mxu0 0.0
  %325 = vmatmul.mubr.f32.gmra.mxu0 %v96
  %v326 = vpop.f32.mrf.mxu0
  %v327 = vadd.f32 %v71, %v326
  %v328 = vpop.f32.mrf.mxu0
  %329 = vmatprep.mubr.f32.mxu0 0.0
  %330 = vmatmul.mubr.f32.gmra.mxu0 %v99
  %v331 = vpop.f32.mrf.mxu0
  %v332 = vadd.f32 %v71, %v331
  %v333 = vpop.f32.mrf.mxu0
  %334 = vmatprep.mubr.f32.mxu0 0.0
  %335 = vmatmul.mubr.f32.gmra.mxu0 %v102
  %v336 = vpop.f32.mrf.mxu0
  %v337 = vadd.f32 %v71, %v336
  %v338 = vpop.f32.mrf.mxu0
  %339 = vmatprep.mubr.f32.mxu0 0.0
  %340 = vmatmul.mubr.f32.gmra.mxu0 %v105
  %v341 = vpop.f32.mrf.mxu0
  %v342 = vadd.f32 %v71, %v341
  %v343 = vpop.f32.mrf.mxu0
  %344 = vmatprep.mubr.f32.mxu0 0.0
  %345 = vmatmul.mubr.f32.gmra.mxu0 %v108
  %v346 = vpop.f32.mrf.mxu0
  %v347 = vadd.f32 %v71, %v346
  %v348 = vpop.f32.mrf.mxu0
  %349 = vmatprep.mubr.f32.mxu0 0.0
  %350 = vmatmul.mubr.f32.gmra.mxu0 %v111
  %v351 = vpop.f32.mrf.mxu0
  %v352 = vadd.f32 %v71, %v351
  %v353 = vpop.f32.mrf.mxu0
  %354 = vmatprep.mubr.f32.mxu0 0.0
  %355 = vmatmul.mubr.f32.gmra.mxu0 %v114
  %v356 = vpop.f32.mrf.mxu0
  %v357 = vadd.f32 %v71, %v356
  %v358 = vpop.f32.mrf.mxu0
  %359 = vmatprep.mubr.f32.mxu0 0.0
  %360 = vmatmul.mubr.f32.gmra.mxu0 %v117
  %v361 = vpop.f32.mrf.mxu0
  %v362 = vadd.f32 %v71, %v361
  %v363 = vpop.f32.mrf.mxu0
  %364 = vmatprep.mubr.f32.mxu0 0.0
  %365 = vmatmul.mubr.f32.gmra.mxu0 %v120
  %v366 = vpop.f32.mrf.mxu0
  %v367 = vadd.f32 %v71, %v366
  %v368 = vpop.f32.mrf.mxu0
  %369 = vmatprep.mubr.f32.mxu0 0.0
  %370 = vmatmul.mubr.f32.gmra.mxu0 %v123
  %v371 = vpop.f32.mrf.mxu0
  %v372 = vadd.f32 %v71, %v371
  %v373 = vpop.f32.mrf.mxu0
  %374 = vmatprep.mubr.f32.mxu0 0.0
  %375 = vmatmul.mubr.f32.gmra.mxu0 %v126
  %v376 = vpop.f32.mrf.mxu0
  %v377 = vadd.f32 %v71, %v376
  %v378 = vpop.f32.mrf.mxu0
  %379 = vmatprep.mubr.f32.mxu0 0.0
  %380 = vmatmul.mubr.f32.gmra.mxu0 %v129
  %v381 = vpop.f32.mrf.mxu0
  %v382 = vadd.f32 %v71, %v381
  %v383 = vpop.f32.mrf.mxu0
  %384 = vmatprep.mubr.f32.mxu0 0.0
  %385 = vmatmul.mubr.f32.gmra.mxu0 %v132
  %v386 = vpop.f32.mrf.mxu0
  %v387 = vadd.f32 %v71, %v386
  %v388 = vpop.f32.mrf.mxu0
  %389 = vmatprep.mubr.f32.mxu0 0.0
  %390 = vmatmul.mubr.f32.gmra.mxu0 %v135
  %v391 = vpop.f32.mrf.mxu0
  %v392 = vadd.f32 %v71, %v391
  %v393 = vpop.f32.mrf.mxu0
  %394 = vmatprep.mubr.f32.mxu0 0.0
  %395 = vmatmul.mubr.f32.gmra.mxu0 %v138
  %v396 = vpop.f32.mrf.mxu0
  %v397 = vadd.f32 %v71, %v396
  %v398 = vpop.f32.mrf.mxu0
  %399 = vmatprep.mubr.f32.mxu0 0.0
  %400 = vmatmul.mubr.f32.gmra.mxu0 %v141
  %v401 = vpop.f32.mrf.mxu0
  %v402 = vadd.f32 %v71, %v401
  %v403 = vpop.f32.mrf.mxu0
  %404 = vmatprep.mubr.f32.mxu0 0.0
  %405 = vmatmul.mubr.f32.gmra.mxu0 %v144
  %v406 = vpop.f32.mrf.mxu0
  %v407 = vadd.f32 %v71, %v406
  %v408 = vpop.f32.mrf.mxu0
  %409 = vmatprep.mubr.f32.mxu0 0.0
  %410 = vmatmul.mubr.f32.gmra.mxu0 %v147
  %v411 = vpop.f32.mrf.mxu0
  %v412 = vadd.f32 %v71, %v411
  %v413 = vpop.f32.mrf.mxu0
  %414 = vmatprep.mubr.f32.mxu0 0.0
  %415 = vmatmul.mubr.f32.gmra.mxu0 %v150
  %v416 = vpop.f32.mrf.mxu0
  %v417 = vadd.f32 %v71, %v416
  %v418 = vpop.f32.mrf.mxu0
  %419 = vmatprep.mubr.f32.mxu0 0.0
  %420 = vmatmul.mubr.f32.gmra.mxu0 %v153
  %v421 = vpop.f32.mrf.mxu0
  %v422 = vadd.f32 %v71, %v421
  %v423 = vpop.f32.mrf.mxu0
  %424 = vmatprep.mubr.f32.mxu0 0.0
  %425 = vmatmul.mubr.f32.gmra.mxu0 %v156
  %v426 = vpop.f32.mrf.mxu0
  %v427 = vadd.f32 %v71, %v426
  %v428 = vpop.f32.mrf.mxu0
  %429 = vmatprep.mubr.f32.mxu0 0.0
  %430 = vmatmul.mubr.f32.gmra.mxu0 %v159
  %v431 = vpop.f32.mrf.mxu0
  %v432 = vadd.f32 %v71, %v431
  %v433 = vpop.f32.mrf.mxu0
  %434 = vmatprep.mubr.f32.mxu0 0.0
  %435 = vmatmul.mubr.f32.gmra.mxu0 %v162
  %v436 = vpop.f32.mrf.mxu0
  %v437 = vadd.f32 %v71, %v436
  %v438 = vpop.f32.mrf.mxu0
  %439 = vmatprep.mubr.f32.mxu0 0.0
  %440 = vmatmul.mubr.f32.gmra.mxu0 %v165
  %v441 = vpop.f32.mrf.mxu0
  %v442 = vadd.f32 %v71, %v441
  %v443 = vpop.f32.mrf.mxu0
  %444 = vmatprep.mubr.f32.mxu0 0.0
  %445 = vmatmul.mubr.f32.gmra.mxu0 %v168
  %v446 = vpop.f32.mrf.mxu0
  %v447 = vadd.f32 %v71, %v446
  %v448 = vpop.f32.mrf.mxu0
  %449 = vmatprep.mubr.f32.mxu0 0.0
  %450 = vmatmul.mubr.f32.gmra.mxu0 %v171
  %v451 = vpop.f32.mrf.mxu0
  %v452 = vadd.f32 %v71, %v451
  %v453 = vpop.f32.mrf.mxu0
  %454 = vmatprep.mubr.f32.mxu0 0.0
  %455 = vmatmul.mubr.f32.gmra.mxu0 %v174
  %v456 = vpop.f32.mrf.mxu0
  %v457 = vadd.f32 %v71, %v456
  %v458 = vpop.f32.mrf.mxu0
  %459 = vmatprep.mubr.f32.mxu0 0.0
  %460 = vmatmul.mubr.f32.gmra.mxu0 %v177
  %v461 = vpop.f32.mrf.mxu0
  %v462 = vadd.f32 %v71, %v461
  %v463 = vpop.f32.mrf.mxu0
  %464 = vmatprep.mubr.f32.mxu0 0.0
  %465 = vmatmul.mubr.f32.gmra.mxu0 %v180
  %v466 = vpop.f32.mrf.mxu0
  %v467 = vadd.f32 %v71, %v466
  %v468 = vpop.f32.mrf.mxu0
  %469 = vmatprep.mubr.f32.mxu0 0.0
  %470 = vmatmul.mubr.f32.gmra.mxu0 %v183
  %v471 = vpop.f32.mrf.mxu0
  %v472 = vadd.f32 %v71, %v471
  %v473 = vpop.f32.mrf.mxu0
  %474 = vmatprep.mubr.f32.mxu0 0.0
  %475 = vmatmul.mubr.f32.gmra.mxu0 %v186
  %v476 = vpop.f32.mrf.mxu0
  %v477 = vadd.f32 %v71, %v476
  %v478 = vpop.f32.mrf.mxu0
  %479 = vmatprep.mubr.f32.mxu0 0.0
  %480 = vmatmul.mubr.f32.gmra.mxu0 %v189
  %v481 = vpop.f32.mrf.mxu0
  %v482 = vadd.f32 %v71, %v481
  %v483 = vpop.f32.mrf.mxu0
  %484 = vmatprep.mubr.f32.mxu0 0.0
  %485 = vmatmul.mubr.f32.gmra.mxu0 %v192
  %v486 = vpop.f32.mrf.mxu0
  %v487 = vadd.f32 %v71, %v486
  %v488 = vpop.f32.mrf.mxu0
  %489 = vmatprep.mubr.f32.mxu0 0.0
  %490 = vmatmul.mubr.f32.gmra.mxu0 %v195
  %v491 = vpop.f32.mrf.mxu0
  %v492 = vadd.f32 %v71, %v491
  %v493 = vpop.f32.mrf.mxu0
  %494 = vmatprep.mubr.f32.mxu0 0.0
  %495 = vmatmul.mubr.f32.gmra.mxu0 %v198
  %v496 = vpop.f32.mrf.mxu0
  %v497 = vadd.f32 %v71, %v496
  %v498 = vpop.f32.mrf.mxu0
  %499 = vmatprep.mubr.f32.mxu0 0.0
  %500 = vmatmul.mubr.f32.gmra.mxu0 %v201
  %v501 = vpop.f32.mrf.mxu0
  %v502 = vadd.f32 %v71, %v501
  %v503 = vpop.f32.mrf.mxu0
  %504 = vmatprep.mubr.f32.mxu0 0.0
  %505 = vmatmul.mubr.f32.gmra.mxu0 %v204
  %v506 = vpop.f32.mrf.mxu0
  %v507 = vadd.f32 %v71, %v506
  %v508 = vpop.f32.mrf.mxu0
  %509 = vmatprep.mubr.f32.mxu0 0.0
  %510 = vmatmul.mubr.f32.gmra.mxu0 %v207
  %v511 = vpop.f32.mrf.mxu0
  %v512 = vadd.f32 %v71, %v511
  %v513 = vpop.f32.mrf.mxu0
  %514 = vmatprep.mubr.f32.mxu0 0.0
  %515 = vmatmul.mubr.f32.gmra.mxu0 %v210
  %v516 = vpop.f32.mrf.mxu0
  %v517 = vadd.f32 %v71, %v516
  %v518 = vpop.f32.mrf.mxu0
  %519 = vmatprep.mubr.f32.mxu0 0.0
  %520 = vmatmul.mubr.f32.gmra.mxu0 %v213
  %v521 = vpop.f32.mrf.mxu0
  %v522 = vadd.f32 %v71, %v521
  %v523 = vpop.f32.mrf.mxu0
  %524 = vmatprep.mubr.f32.mxu0 0.0
  %525 = vmatmul.mubr.f32.gmra.mxu0 %v216
  %v526 = vpop.f32.mrf.mxu0
  %v527 = vadd.f32 %v71, %v526
  %v528 = vpop.f32.mrf.mxu0
  %529 = vmatprep.mubr.f32.mxu0 0.0
  %530 = vmatmul.mubr.f32.gmra.mxu0 %v219
  %v531 = vpop.f32.mrf.mxu0
  %v532 = vadd.f32 %v71, %v531
  %v533 = vpop.f32.mrf.mxu0
  %534 = vdwg.mxu0
  %v535 = vmul.f32 %v292, 0.01
  %v536 = vmul.f32 %v297, 0.01
  %v537 = vmul.f32 %v302, 0.01
  %v538 = vmul.f32 %v307, 0.01
  %v539 = vmul.f32 %v312, 0.01
  %v540 = vmul.f32 %v317, 0.01
  %v541 = vmul.f32 %v322, 0.01
  %v542 = vmul.f32 %v327, 0.01
  %v543 = vmul.f32 %v332, 0.01
  %v544 = vmul.f32 %v337, 0.01
  %v545 = vmul.f32 %v342, 0.01
  %v546 = vmul.f32 %v347, 0.01
  %v547 = vmul.f32 %v352, 0.01
  %v548 = vmul.f32 %v357, 0.01
  %v549 = vmul.f32 %v362, 0.01
  %v550 = vmul.f32 %v367, 0.01
  %v551 = vmul.f32 %v372, 0.01
  %v552 = vmul.f32 %v377, 0.01
  %v553 = vmul.f32 %v382, 0.01
  %v554 = vmul.f32 %v387, 0.01
  %v555 = vmul.f32 %v392, 0.01
  %v556 = vmul.f32 %v397, 0.01
  %v557 = vmul.f32 %v402, 0.01
  %v558 = vmul.f32 %v407, 0.01
  %v559 = vmul.f32 %v412, 0.01
  %v560 = vmul.f32 %v417, 0.01
  %v561 = vmul.f32 %v422, 0.01
  %v562 = vmul.f32 %v427, 0.01
  %v563 = vmul.f32 %v432, 0.01
  %v564 = vmul.f32 %v437, 0.01
  %v565 = vmul.f32 %v442, 0.01
  %v566 = vmul.f32 %v447, 0.01
  %v567 = vmul.f32 %v452, 0.01
  %v568 = vmul.f32 %v457, 0.01
  %v569 = vmul.f32 %v462, 0.01
  %v570 = vmul.f32 %v467, 0.01
  %v571 = vmul.f32 %v472, 0.01
  %v572 = vmul.f32 %v477, 0.01
  %v573 = vmul.f32 %v482, 0.01
  %v574 = vmul.f32 %v487, 0.01
  %v575 = vmul.f32 %v492, 0.01
  %v576 = vmul.f32 %v497, 0.01
  %v577 = vmul.f32 %v502, 0.01
  %v578 = vmul.f32 %v507, 0.01
  %v579 = vmul.f32 %v512, 0.01
  %v580 = vmul.f32 %v517, 0.01
  %v581 = vmul.f32 %v522, 0.01
  %v582 = vmul.f32 %v527, 0.01
  %v583 = vmul.f32 %v532, 0.01
  %v584 = vmax.f32 %v292, %v535
  %v585 = vmax.f32 %v297, %v536
  %v586 = vmax.f32 %v302, %v537
  %v587 = vmax.f32 %v307, %v538
  %v588 = vmax.f32 %v312, %v539
  %v589 = vmax.f32 %v317, %v540
  %v590 = vmax.f32 %v322, %v541
  %v591 = vmax.f32 %v327, %v542
  %v592 = vmax.f32 %v332, %v543
  %v593 = vmax.f32 %v337, %v544
  %v594 = vmax.f32 %v342, %v545
  %v595 = vmax.f32 %v347, %v546
  %v596 = vmax.f32 %v352, %v547
  %v597 = vmax.f32 %v357, %v548
  %v598 = vmax.f32 %v362, %v549
  %v599 = vmax.f32 %v367, %v550
  %v600 = vmax.f32 %v372, %v551
  %v601 = vmax.f32 %v377, %v552
  %v602 = vmax.f32 %v382, %v553
  %v603 = vmax.f32 %v387, %v554
  %v604 = vmax.f32 %v392, %v555
  %v605 = vmax.f32 %v397, %v556
  %v606 = vmax.f32 %v402, %v557
  %v607 = vmax.f32 %v407, %v558
  %v608 = vmax.f32 %v412, %v559
  %v609 = vmax.f32 %v417, %v560
  %v610 = vmax.f32 %v422, %v561
  %v611 = vmax.f32 %v427, %v562
  %v612 = vmax.f32 %v432, %v563
  %v613 = vmax.f32 %v437, %v564
  %v614 = vmax.f32 %v442, %v565
  %v615 = vmax.f32 %v447, %v566
  %v616 = vmax.f32 %v452, %v567
  %v617 = vmax.f32 %v457, %v568
  %v618 = vmax.f32 %v462, %v569
  %v619 = vmax.f32 %v467, %v570
  %v620 = vmax.f32 %v472, %v571
  %v621 = vmax.f32 %v477, %v572
  %v622 = vmax.f32 %v482, %v573
  %v623 = vmax.f32 %v487, %v574
  %v624 = vmax.f32 %v492, %v575
  %v625 = vmax.f32 %v497, %v576
  %v626 = vmax.f32 %v502, %v577
  %v627 = vmax.f32 %v507, %v578
  %v628 = vmax.f32 %v512, %v579
  %v629 = vmax.f32 %v517, %v580
  %v630 = vmax.f32 %v522, %v581
  %v631 = vmax.f32 %v527, %v582
  %v632 = vmax.f32 %v532, %v583
  %v633 = vpack.c.bf16 %v585, %v584
  %v634 = vpack.c.bf16 %v587, %v586
  %v635 = vpack.c.bf16 %v589, %v588
  %v636 = vpack.c.bf16 %v591, %v590
  %v637 = vpack.c.bf16 %v593, %v592
  %v638 = vpack.c.bf16 %v595, %v594
  %v639 = vpack.c.bf16 %v597, %v596
  %v640 = vpack.c.bf16 %v599, %v598
  %v641 = vpack.c.bf16 %v601, %v600
  %v642 = vpack.c.bf16 %v603, %v602
  %v643 = vpack.c.bf16 %v605, %v604
  %v644 = vpack.c.bf16 %v607, %v606
  %v645 = vpack.c.bf16 %v609, %v608
  %v646 = vpack.c.bf16 %v611, %v610
  %v647 = vpack.c.bf16 %v613, %v612
  %v648 = vpack.c.bf16 %v615, %v614
  %v649 = vpack.c.bf16 %v617, %v616
  %v650 = vpack.c.bf16 %v619, %v618
  %v651 = vpack.c.bf16 %v621, %v620
  %v652 = vpack.c.bf16 %v623, %v622
  %v653 = vpack.c.bf16 %v625, %v624
  %v654 = vpack.c.bf16 %v627, %v626
  %v655 = vpack.c.bf16 %v629, %v628
  %v656 = vpack.c.bf16 %v631, %v630
  %v657 = vpack.c.bf16 %v632, %v632
  %v683 = vunpack.c.l.b16 %v633
  %v684 = vunpack.c.h.b16 %v633
  %v685 = vunpack.c.l.b16 %v634
  %v686 = vunpack.c.h.b16 %v634
  %v687 = vunpack.c.l.b16 %v635
  %v688 = vunpack.c.h.b16 %v635
  %v689 = vunpack.c.l.b16 %v636
  %v690 = vunpack.c.h.b16 %v636
  %v691 = vunpack.c.l.b16 %v637
  %v692 = vunpack.c.h.b16 %v637
  %v693 = vunpack.c.l.b16 %v638
  %v694 = vunpack.c.h.b16 %v638
  %v695 = vunpack.c.l.b16 %v639
  %v696 = vunpack.c.h.b16 %v639
  %v697 = vunpack.c.l.b16 %v640
  %v698 = vunpack.c.h.b16 %v640
  %v699 = vunpack.c.l.b16 %v641
  %v700 = vunpack.c.h.b16 %v641
  %v701 = vunpack.c.l.b16 %v642
  %v702 = vunpack.c.h.b16 %v642
  %v703 = vunpack.c.l.b16 %v643
  %v704 = vunpack.c.h.b16 %v643
  %v705 = vunpack.c.l.b16 %v644
  %v706 = vunpack.c.h.b16 %v644
  %v707 = vunpack.c.l.b16 %v645
  %v708 = vunpack.c.h.b16 %v645
  %v709 = vunpack.c.l.b16 %v646
  %v710 = vunpack.c.h.b16 %v646
  %v711 = vunpack.c.l.b16 %v647
  %v712 = vunpack.c.h.b16 %v647
  %v713 = vunpack.c.l.b16 %v648
  %v714 = vunpack.c.h.b16 %v648
  %v715 = vunpack.c.l.b16 %v649
  %v716 = vunpack.c.h.b16 %v649
  %v717 = vunpack.c.l.b16 %v650
  %v718 = vunpack.c.h.b16 %v650
  %v719 = vunpack.c.l.b16 %v651
  %v720 = vunpack.c.h.b16 %v651
  %v721 = vunpack.c.l.b16 %v652
  %v722 = vunpack.c.h.b16 %v652
  %v723 = vunpack.c.l.b16 %v653
  %v724 = vunpack.c.h.b16 %v653
  %v725 = vunpack.c.l.b16 %v654
  %v726 = vunpack.c.h.b16 %v654
  %v727 = vunpack.c.l.b16 %v655
  %v728 = vunpack.c.h.b16 %v655
  %v729 = vunpack.c.l.b16 %v656
  %v730 = vunpack.c.h.b16 %v656
  %v731 = vunpack.c.l.b16 %v657
  %v732 = vpack.c.b16 %v683, %v683
  %v733 = vpack.c.b16 %v684, %v684
  %v734 = vpack.c.b16 %v685, %v685
  %v735 = vpack.c.b16 %v686, %v686
  %v736 = vpack.c.b16 %v687, %v687
  %v737 = vpack.c.b16 %v688, %v688
  %v738 = vpack.c.b16 %v689, %v689
  %v739 = vpack.c.b16 %v690, %v690
  %v740 = vpack.c.b16 %v691, %v691
  %v741 = vpack.c.b16 %v692, %v692
  %v742 = vpack.c.b16 %v693, %v693
  %v743 = vpack.c.b16 %v694, %v694
  %v744 = vpack.c.b16 %v695, %v695
  %v745 = vpack.c.b16 %v696, %v696
  %v746 = vpack.c.b16 %v697, %v697
  %v747 = vpack.c.b16 %v698, %v698
  %v748 = vpack.c.b16 %v699, %v699
  %v749 = vpack.c.b16 %v700, %v700
  %v750 = vpack.c.b16 %v701, %v701
  %v751 = vpack.c.b16 %v702, %v702
  %v752 = vpack.c.b16 %v703, %v703
  %v753 = vpack.c.b16 %v704, %v704
  %v754 = vpack.c.b16 %v705, %v705
  %v755 = vpack.c.b16 %v706, %v706
  %v756 = vpack.c.b16 %v707, %v707
  %v757 = vpack.c.b16 %v708, %v708
  %v758 = vpack.c.b16 %v709, %v709
  %v759 = vpack.c.b16 %v710, %v710
  %v760 = vpack.c.b16 %v711, %v711
  %v761 = vpack.c.b16 %v712, %v712
  %v762 = vpack.c.b16 %v713, %v713
  %v763 = vpack.c.b16 %v714, %v714
  %v764 = vpack.c.b16 %v715, %v715
  %v765 = vpack.c.b16 %v716, %v716
  %v766 = vpack.c.b16 %v717, %v717
  %v767 = vpack.c.b16 %v718, %v718
  %v768 = vpack.c.b16 %v719, %v719
  %v769 = vpack.c.b16 %v720, %v720
  %v770 = vpack.c.b16 %v721, %v721
  %v771 = vpack.c.b16 %v722, %v722
  %v772 = vpack.c.b16 %v723, %v723
  %v773 = vpack.c.b16 %v724, %v724
  %v774 = vpack.c.b16 %v725, %v725
  %v775 = vpack.c.b16 %v726, %v726
  %v776 = vpack.c.b16 %v727, %v727
  %v777 = vpack.c.b16 %v728, %v728
  %v778 = vpack.c.b16 %v729, %v729
  %v779 = vpack.c.b16 %v730, %v730
  %v780 = vpack.c.b16 %v731, %v731
  %vm830 = vcmask 519168
  %831 = vst.msk [vmem:[%s3] sm:$0xf] %vm830, %v732
  %832 = vst.msk [vmem:[%s3 + $0x4] sm:$0xf] %vm830, %v733
  %833 = vst.msk [vmem:[%s3 + $0x8] sm:$0xf] %vm830, %v734
  %834 = vst.msk [vmem:[%s3 + $0xc] sm:$0xf] %vm830, %v735
  %835 = vst.msk [vmem:[%s3 + $0x10] sm:$0xf] %vm830, %v736
  %836 = vst.msk [vmem:[%s3 + $0x14] sm:$0xf] %vm830, %v737
  %837 = vst.msk [vmem:[%s3 + $0x18] sm:$0xf] %vm830, %v738
  %838 = vst.msk [vmem:[%s3 + $0x1c] sm:$0xf] %vm830, %v739
  %839 = vst.msk [vmem:[%s3 + $0x20] sm:$0xf] %vm830, %v740
  %840 = vst.msk [vmem:[%s3 + $0x24] sm:$0xf] %vm830, %v741
  %841 = vst.msk [vmem:[%s3 + $0x28] sm:$0xf] %vm830, %v742
  %842 = vst.msk [vmem:[%s3 + $0x2c] sm:$0xf] %vm830, %v743
  %843 = vst.msk [vmem:[%s3 + $0x30] sm:$0xf] %vm830, %v744
  %844 = vst.msk [vmem:[%s3 + $0x34] sm:$0xf] %vm830, %v745
  %845 = vst.msk [vmem:[%s3 + $0x38] sm:$0xf] %vm830, %v746
  %846 = vst.msk [vmem:[%s3 + $0x3c] sm:$0xf] %vm830, %v747
  %847 = vst.msk [vmem:[%s3 + $0x40] sm:$0xf] %vm830, %v748
  %848 = vst.msk [vmem:[%s3 + $0x44] sm:$0xf] %vm830, %v749
  %849 = vst.msk [vmem:[%s3 + $0x48] sm:$0xf] %vm830, %v750
  %850 = vst.msk [vmem:[%s3 + $0x4c] sm:$0xf] %vm830, %v751
  %851 = vst.msk [vmem:[%s3 + $0x50] sm:$0xf] %vm830, %v752
  %852 = vst.msk [vmem:[%s3 + $0x54] sm:$0xf] %vm830, %v753
  %853 = vst.msk [vmem:[%s3 + $0x58] sm:$0xf] %vm830, %v754
  %854 = vst.msk [vmem:[%s3 + $0x5c] sm:$0xf] %vm830, %v755
  %855 = vst.msk [vmem:[%s3 + $0x60] sm:$0xf] %vm830, %v756
  %856 = vst.msk [vmem:[%s3 + $0x64] sm:$0xf] %vm830, %v757
  %857 = vst.msk [vmem:[%s3 + $0x68] sm:$0xf] %vm830, %v758
  %858 = vst.msk [vmem:[%s3 + $0x6c] sm:$0xf] %vm830, %v759
  %859 = vst.msk [vmem:[%s3 + $0x70] sm:$0xf] %vm830, %v760
  %860 = vst.msk [vmem:[%s3 + $0x74] sm:$0xf] %vm830, %v761
  %861 = vst.msk [vmem:[%s3 + $0x78] sm:$0xf] %vm830, %v762
  %862 = vst.msk [vmem:[%s3 + $0x7c] sm:$0xf] %vm830, %v763
  %863 = vst.msk [vmem:[%s3 + $0x80] sm:$0xf] %vm830, %v764
  %864 = vst.msk [vmem:[%s3 + $0x84] sm:$0xf] %vm830, %v765
  %865 = vst.msk [vmem:[%s3 + $0x88] sm:$0xf] %vm830, %v766
  %866 = vst.msk [vmem:[%s3 + $0x8c] sm:$0xf] %vm830, %v767
  %867 = vst.msk [vmem:[%s3 + $0x90] sm:$0xf] %vm830, %v768
  %868 = vst.msk [vmem:[%s3 + $0x94] sm:$0xf] %vm830, %v769
  %869 = vst.msk [vmem:[%s3 + $0x98] sm:$0xf] %vm830, %v770
  %870 = vst.msk [vmem:[%s3 + $0x9c] sm:$0xf] %vm830, %v771
  %871 = vst.msk [vmem:[%s3 + $0xa0] sm:$0xf] %vm830, %v772
  %872 = vst.msk [vmem:[%s3 + $0xa4] sm:$0xf] %vm830, %v773
  %873 = vst.msk [vmem:[%s3 + $0xa8] sm:$0xf] %vm830, %v774
  %874 = vst.msk [vmem:[%s3 + $0xac] sm:$0xf] %vm830, %v775
  %875 = vst.msk [vmem:[%s3 + $0xb0] sm:$0xf] %vm830, %v776
  %876 = vst.msk [vmem:[%s3 + $0xb4] sm:$0xf] %vm830, %v777
  %877 = vst.msk [vmem:[%s3 + $0xb8] sm:$0xf] %vm830, %v778
  %878 = vst.msk [vmem:[%s3 + $0xbc] sm:$0xf] %vm830, %v779
  %879 = vst.msk [vmem:[%s3 + $0xc0] sm:$0xf] %vm830, %v780
  // Predicated region
  $region14: #{_lambda_.3} parent=0 // pred_check
    _
  $region15: #{_lambda_.3} parent=0 // pred_check_branch
    %881 = sbr.rel (0) target = $region17
  $region16: #{_lambda_.3} parent=0 // pred_region
    _
  $region17: #{_lambda_.3} parent=0 // pred_fallthru
    _
  // Predicated region
  $region18: #{_lambda_.3} parent=0 // pred_check
    _
  $region19: #{_lambda_.3} parent=0 // pred_check_branch
    %883 = sbr.rel (0) target = $region21
  $region20: #{_lambda_.3} parent=0 // pred_region
    _
  $region21: #{_lambda_.3} parent=0 // pred_fallthru
    _

// kernel: tile.7
$region0: #{tile.7}
  %s0 = inlined_call_operand.vmem [shape: f32[2,9,128], index: 0, kind: input, shape index: {}]
  %s1 = inlined_call_operand.vmem [shape: f32[18,128], index: 1, kind: output, shape index: {}]
  %v2 = vld [vmem:[%s0] sm:$0xff]
  %3 = vst [vmem:[%s1] sm:$0xff] %v2
  %s4 = scalar_lea.vmem %s0, 8
  %s5 = smov 3
  %v6 = vld [vmem:[%s4] ss:$8 sm:%s5]
  %s7 = scalar_lea.vmem %s1, 8
  %8 = vst [vmem:[%s7] sm:$0x3] %v6
  %s9 = scalar_lea.vmem %s0, 17
  %v10 = vld [vmem:[%s9] sm:$0xff]
  %s11 = scalar_lea.vmem %s1, 10
  %12 = vst [vmem:[%s11] sm:$0xff] %v10

// kernel: _lambda_.4
$region0: #{_lambda_.4}
  #allocation0 [shape = 'u32[]', space=smem, size = 0x4, offset = 0x4, fixed_abs, tag = 'smem constant byte address 0x4 - core index']
  #allocation1 [shape = 'u32[144,128]{1,0:T(1,128)}', space=vmem, size = 0x12000, scoped, tag = 'internal scratch']
  %s0 = inlined_call_operand.vmem [shape: bf16[98,576], index: 0, kind: input, shape index: {}]
  %s1 = inlined_call_operand.vmem [shape: bf16[576,64], index: 1, kind: input, shape index: {}]
  %s2 = inlined_call_operand.vmem [shape: f32[1,64], index: 2, kind: input, shape index: {}]
  %s3 = inlined_call_operand.vmem [shape: f32[1,64], index: 3, kind: input, shape index: {}]
  %s4 = inlined_call_operand.vmem [shape: f32[1,64], index: 4, kind: input, shape index: {}]
  %s5 = inlined_call_operand.vmem [shape: bf16[98,64], index: 5, kind: output, shape index: {}]
  %s6 = sld [smem:[#allocation0]]
  $region30: #{_lambda_.4} parent=0
    _
  %s8 = ssub.s32 1, %s6
  %s9 = scalar_select 0, %s8, %s6
  // Predicated region
  $region2: #{_lambda_.4} parent=0 // pred_check
    _
  $region3: #{_lambda_.4} parent=0 // pred_check_branch
    %11 = sbr.rel (0) target = $region5
  $region4: #{_lambda_.4} parent=0 // pred_region
    _
  $region5: #{_lambda_.4} parent=0 // pred_fallthru
    _
  // Predicated region
  $region6: #{_lambda_.4} parent=0 // pred_check
    _
  $region7: #{_lambda_.4} parent=0 // pred_check_branch
    %13 = sbr.rel (0) target = $region9
  $region8: #{_lambda_.4} parent=0 // pred_region
    _
  $region9: #{_lambda_.4} parent=0 // pred_fallthru
    _
  // Predicated region
  $region10: #{_lambda_.4} parent=0 // pred_check
    _
  $region11: #{_lambda_.4} parent=0 // pred_check_branch
    %15 = sbr.rel (0) target = $region13
  $region12: #{_lambda_.4} parent=0 // pred_region
    _
  $region13: #{_lambda_.4} parent=0 // pred_fallthru
    _
  // Predicated region
  $region14: #{_lambda_.4} parent=0 // pred_check
    _
  $region15: #{_lambda_.4} parent=0 // pred_check_branch
    %17 = sbr.rel (0) target = $region17
  $region16: #{_lambda_.4} parent=0 // pred_region
    _
  $region17: #{_lambda_.4} parent=0 // pred_fallthru
    _
  // Predicated region
  $region18: #{_lambda_.4} parent=0 // pred_check
    _
  $region19: #{_lambda_.4} parent=0 // pred_check_branch
    %19 = sbr.rel (0) target = $region21
  $region20: #{_lambda_.4} parent=0 // pred_region
    _
  $region21: #{_lambda_.4} parent=0 // pred_fallthru
    _
  %v21 = vld [vmem:[%s0] sm:$0xff]
  %v22 = vld [vmem:[%s0 + $0x8] sm:$0xff]
  %v23 = vld [vmem:[%s0 + $0x10] sm:$0xf]
  %v24 = vld [vmem:[%s0 + $0x14] sm:$0xff]
  %v25 = vld [vmem:[%s0 + $0x1c] sm:$0xff]
  %v26 = vld [vmem:[%s0 + $0x24] sm:$0xf]
  %v27 = vld [vmem:[%s0 + $0x28] sm:$0xff]
  %v28 = vld [vmem:[%s0 + $0x30] sm:$0xff]
  %v29 = vld [vmem:[%s0 + $0x38] sm:$0xf]
  %v30 = vld [vmem:[%s0 + $0x3c] sm:$0xff]
  %v31 = vld [vmem:[%s0 + $0x44] sm:$0xff]
  %v32 = vld [vmem:[%s0 + $0x4c] sm:$0xf]
  %v33 = vld [vmem:[%s0 + $0x50] sm:$0xff]
  %v34 = vld [vmem:[%s0 + $0x58] sm:$0xff]
  %v35 = vld [vmem:[%s0 + $0x60] sm:$0xf]
  %v36 = vld [vmem:[%s0 + $0x64] sm:$0xff]
  %v37 = vld [vmem:[%s0 + $0x6c] sm:$0xff]
  %v38 = vld [vmem:[%s0 + $0x74] sm:$0xf]
  %v39 = vld [vmem:[%s0 + $0x78] sm:$0xff]
  %v40 = vld [vmem:[%s0 + $0x80] sm:$0xff]
  %v41 = vld [vmem:[%s0 + $0x88] sm:$0xf]
  %v42 = vld [vmem:[%s0 + $0x8c] sm:$0xff]
  %v43 = vld [vmem:[%s0 + $0x94] sm:$0xff]
  %v44 = vld [vmem:[%s0 + $0x9c] sm:$0xf]
  %v45 = vld [vmem:[%s0 + $0xa0] sm:$0xff]
  %v46 = vld [vmem:[%s0 + $0xa8] sm:$0xff]
  %v47 = vld [vmem:[%s0 + $0xb0] sm:$0xf]
  %v48 = vld [vmem:[%s0 + $0xb4] sm:$0xff]
  %v49 = vld [vmem:[%s0 + $0xbc] sm:$0xff]
  %v50 = vld [vmem:[%s0 + $0xc4] sm:$0xf]
  %v51 = vld [vmem:[%s0 + $0xc8] sm:$0xff]
  %v52 = vld [vmem:[%s0 + $0xd0] sm:$0xff]
  %v53 = vld [vmem:[%s0 + $0xd8] sm:$0xf]
  %v54 = vld [vmem:[%s0 + $0xdc] sm:$0xff]
  %v55 = vld [vmem:[%s0 + $0xe4] sm:$0xff]
  %v56 = vld [vmem:[%s0 + $0xec] sm:$0xf]
  %v57 = vld [vmem:[%s0 + $0xf0] sm:$0x11]
  %v58 = vld [vmem:[%s0 + $0xf8] sm:$0x11]
  %v59 = vld [vmem:[%s0 + $0x100] sm:$0x1]
  %v60 = vld [vmem:[%s1] sm:$0xf]
  %v61 = vld [vmem:[%s1 + $0x4] sm:$0xf]
  %v62 = vld [vmem:[%s1 + $0x8] sm:$0xf]
  %v63 = vld [vmem:[%s1 + $0xc] sm:$0xf]
  %v64 = vld [vmem:[%s1 + $0x10] sm:$0xf]
  %v65 = vld [vmem:[%s1 + $0x14] sm:$0xf]
  %v66 = vld [vmem:[%s1 + $0x18] sm:$0xf]
  %v67 = vld [vmem:[%s1 + $0x1c] sm:$0xf]
  %v68 = vld [vmem:[%s1 + $0x20] sm:$0xf]
  %v69 = vld [vmem:[%s1 + $0x24] sm:$0xf]
  %v70 = vld [vmem:[%s1 + $0x28] sm:$0xf]
  %v71 = vld [vmem:[%s1 + $0x2c] sm:$0xf]
  %v72 = vld [vmem:[%s1 + $0x30] sm:$0xf]
  %v73 = vld [vmem:[%s1 + $0x34] sm:$0xf]
  %v74 = vld [vmem:[%s1 + $0x38] sm:$0xf]
  %v75 = vld [vmem:[%s1 + $0x3c] sm:$0xf]
  %v76 = vld [vmem:[%s1 + $0x40] sm:$0xf]
  %v77 = vld [vmem:[%s1 + $0x44] sm:$0xf]
  %v78 = vld [vmem:[%s1 + $0x48] sm:$0xf]
  %v79 = vld [vmem:[%s1 + $0x4c] sm:$0xf]
  %v80 = vld [vmem:[%s1 + $0x50] sm:$0xf]
  %v81 = vld [vmem:[%s1 + $0x54] sm:$0xf]
  %v82 = vld [vmem:[%s1 + $0x58] sm:$0xf]
  %v83 = vld [vmem:[%s1 + $0x5c] sm:$0xf]
  %v84 = vld [vmem:[%s1 + $0x60] sm:$0xf]
  %v85 = vld [vmem:[%s1 + $0x64] sm:$0xf]
  %v86 = vld [vmem:[%s1 + $0x68] sm:$0xf]
  %v87 = vld [vmem:[%s1 + $0x6c] sm:$0xf]
  %v88 = vld [vmem:[%s1 + $0x70] sm:$0xf]
  %v89 = vld [vmem:[%s1 + $0x74] sm:$0xf]
  %v90 = vld [vmem:[%s1 + $0x78] sm:$0xf]
  %v91 = vld [vmem:[%s1 + $0x7c] sm:$0xf]
  %v92 = vld [vmem:[%s1 + $0x80] sm:$0xf]
  %v93 = vld [vmem:[%s1 + $0x84] sm:$0xf]
  %v94 = vld [vmem:[%s1 + $0x88] sm:$0xf]
  %v95 = vld [vmem:[%s1 + $0x8c] sm:$0xf]
  %v96 = vld [vmem:[%s1 + $0x90] sm:$0xf]
  %v97 = vld [vmem:[%s1 + $0x94] sm:$0xf]
  %v98 = vld [vmem:[%s1 + $0x98] sm:$0xf]
  %v99 = vld [vmem:[%s1 + $0x9c] sm:$0xf]
  %v100 = vld [vmem:[%s1 + $0xa0] sm:$0xf]
  %v101 = vld [vmem:[%s1 + $0xa4] sm:$0xf]
  %v102 = vld [vmem:[%s1 + $0xa8] sm:$0xf]
  %v103 = vld [vmem:[%s1 + $0xac] sm:$0xf]
  %v104 = vld [vmem:[%s1 + $0xb0] sm:$0xf]
  %v105 = vld [vmem:[%s1 + $0xb4] sm:$0xf]
  %v106 = vld [vmem:[%s1 + $0xb8] sm:$0xf]
  %v107 = vld [vmem:[%s1 + $0xbc] sm:$0xf]
  %v108 = vld [vmem:[%s1 + $0xc0] sm:$0xf]
  %v109 = vld [vmem:[%s1 + $0xc4] sm:$0xf]
  %v110 = vld [vmem:[%s1 + $0xc8] sm:$0xf]
  %v111 = vld [vmem:[%s1 + $0xcc] sm:$0xf]
  %v112 = vld [vmem:[%s1 + $0xd0] sm:$0xf]
  %v113 = vld [vmem:[%s1 + $0xd4] sm:$0xf]
  %v114 = vld [vmem:[%s1 + $0xd8] sm:$0xf]
  %v115 = vld [vmem:[%s1 + $0xdc] sm:$0xf]
  %v116 = vld [vmem:[%s1 + $0xe0] sm:$0xf]
  %v117 = vld [vmem:[%s1 + $0xe4] sm:$0xf]
  %v118 = vld [vmem:[%s1 + $0xe8] sm:$0xf]
  %v119 = vld [vmem:[%s1 + $0xec] sm:$0xf]
  %v120 = vld [vmem:[%s1 + $0xf0] sm:$0xf]
  %v121 = vld [vmem:[%s1 + $0xf4] sm:$0xf]
  %v122 = vld [vmem:[%s1 + $0xf8] sm:$0xf]
  %v123 = vld [vmem:[%s1 + $0xfc] sm:$0xf]
  %v124 = vld [vmem:[%s1 + $0x100] sm:$0xf]
  %v125 = vld [vmem:[%s1 + $0x104] sm:$0xf]
  %v126 = vld [vmem:[%s1 + $0x108] sm:$0xf]
  %v127 = vld [vmem:[%s1 + $0x10c] sm:$0xf]
  %v128 = vld [vmem:[%s1 + $0x110] sm:$0xf]
  %v129 = vld [vmem:[%s1 + $0x114] sm:$0xf]
  %v130 = vld [vmem:[%s1 + $0x118] sm:$0xf]
  %v131 = vld [vmem:[%s1 + $0x11c] sm:$0xf]
  %v132 = vld [vmem:[%s2] sm:$0x1]
  %v134 = vlaneseq
  %v135 = vshrl.u32 %v134, 7
  %v136 = vsub.s32 0, %v135
  %v137 = vrot.slane %v132, %v136
  %v178 = vunpack.c.l.b16 %v21
  %v179 = vunpack.c.h.b16 %v21
  %v180 = vunpack.c.l.b16 %v22
  %v181 = vunpack.c.h.b16 %v22
  %v182 = vunpack.c.l.b16 %v23
  %v183 = vunpack.c.l.b16 %v24
  %v184 = vunpack.c.h.b16 %v24
  %v185 = vunpack.c.l.b16 %v25
  %v186 = vunpack.c.h.b16 %v25
  %v187 = vunpack.c.l.b16 %v26
  %v188 = vunpack.c.l.b16 %v27
  %v189 = vunpack.c.h.b16 %v27
  %v190 = vunpack.c.l.b16 %v28
  %v191 = vunpack.c.h.b16 %v28
  %v192 = vunpack.c.l.b16 %v29
  %v193 = vunpack.c.l.b16 %v30
  %v194 = vunpack.c.h.b16 %v30
  %v195 = vunpack.c.l.b16 %v31
  %v196 = vunpack.c.h.b16 %v31
  %v197 = vunpack.c.l.b16 %v32
  %v198 = vunpack.c.l.b16 %v33
  %v199 = vunpack.c.h.b16 %v33
  %v200 = vunpack.c.l.b16 %v34
  %v201 = vunpack.c.h.b16 %v34
  %v202 = vunpack.c.l.b16 %v35
  %v203 = vunpack.c.l.b16 %v36
  %v204 = vunpack.c.h.b16 %v36
  %v205 = vunpack.c.l.b16 %v37
  %v206 = vunpack.c.h.b16 %v37
  %v207 = vunpack.c.l.b16 %v38
  %v208 = vunpack.c.l.b16 %v39
  %v209 = vunpack.c.h.b16 %v39
  %v210 = vunpack.c.l.b16 %v40
  %v211 = vunpack.c.h.b16 %v40
  %v212 = vunpack.c.l.b16 %v41
  %v213 = vunpack.c.l.b16 %v42
  %v214 = vunpack.c.h.b16 %v42
  %v215 = vunpack.c.l.b16 %v43
  %v216 = vunpack.c.h.b16 %v43
  %v217 = vunpack.c.l.b16 %v44
  %v218 = vunpack.c.l.b16 %v45
  %v219 = vunpack.c.h.b16 %v45
  %v220 = vunpack.c.l.b16 %v46
  %v221 = vunpack.c.h.b16 %v46
  %v222 = vunpack.c.l.b16 %v47
  %v223 = vunpack.c.l.b16 %v48
  %v224 = vunpack.c.h.b16 %v48
  %v225 = vunpack.c.l.b16 %v49
  %v226 = vunpack.c.h.b16 %v49
  %v227 = vunpack.c.l.b16 %v50
  %v228 = vunpack.c.l.b16 %v51
  %v229 = vunpack.c.h.b16 %v51
  %v230 = vunpack.c.l.b16 %v52
  %v231 = vunpack.c.h.b16 %v52
  %v232 = vunpack.c.l.b16 %v53
  %v233 = vunpack.c.l.b16 %v54
  %v234 = vunpack.c.h.b16 %v54
  %v235 = vunpack.c.l.b16 %v55
  %v236 = vunpack.c.h.b16 %v55
  %v237 = vunpack.c.l.b16 %v56
  %v238 = vunpack.c.l.b16 %v57
  %v239 = vunpack.c.h.b16 %v57
  %v240 = vunpack.c.l.b16 %v58
  %v241 = vunpack.c.h.b16 %v58
  %v242 = vunpack.c.l.b16 %v59
  %v243 = vpack.c.b16 %v183, %v178
  %v244 = vpack.c.b16 %v184, %v179
  %v245 = vpack.c.b16 %v185, %v180
  %v246 = vpack.c.b16 %v186, %v181
  %v247 = vpack.c.b16 %v187, %v182
  %v248 = vpack.c.b16 %v193, %v188
  %v249 = vpack.c.b16 %v194, %v189
  %v250 = vpack.c.b16 %v195, %v190
  %v251 = vpack.c.b16 %v196, %v191
  %v252 = vpack.c.b16 %v197, %v192
  %v253 = vpack.c.b16 %v203, %v198
  %v254 = vpack.c.b16 %v204, %v199
  %v255 = vpack.c.b16 %v205, %v200
  %v256 = vpack.c.b16 %v206, %v201
  %v257 = vpack.c.b16 %v207, %v202
  %v258 = vpack.c.b16 %v213, %v208
  %v259 = vpack.c.b16 %v214, %v209
  %v260 = vpack.c.b16 %v215, %v210
  %v261 = vpack.c.b16 %v216, %v211
  %v262 = vpack.c.b16 %v217, %v212
  %v263 = vpack.c.b16 %v223, %v218
  %v264 = vpack.c.b16 %v224, %v219
  %v265 = vpack.c.b16 %v225, %v220
  %v266 = vpack.c.b16 %v226, %v221
  %v267 = vpack.c.b16 %v227, %v222
  %v268 = vpack.c.b16 %v233, %v228
  %v269 = vpack.c.b16 %v234, %v229
  %v270 = vpack.c.b16 %v235, %v230
  %v271 = vpack.c.b16 %v236, %v231
  %v272 = vpack.c.b16 %v237, %v232
  %v273 = vpack.c.b16 %v238, %v238
  %v274 = vpack.c.b16 %v239, %v239
  %v275 = vpack.c.b16 %v240, %v240
  %v276 = vpack.c.b16 %v241, %v241
  %v277 = vpack.c.b16 %v242, %v242
  %v378 = vunpack.c.l.b16 %v60
  %v379 = vunpack.c.l.b16 %v61
  %v380 = vunpack.c.l.b16 %v62
  %v381 = vunpack.c.l.b16 %v63
  %v382 = vunpack.c.l.b16 %v64
  %v383 = vunpack.c.l.b16 %v65
  %v384 = vunpack.c.l.b16 %v66
  %v385 = vunpack.c.l.b16 %v67
  %v386 = vunpack.c.l.b16 %v68
  %v387 = vunpack.c.l.b16 %v69
  %v388 = vunpack.c.l.b16 %v70
  %v389 = vunpack.c.l.b16 %v71
  %v390 = vunpack.c.l.b16 %v72
  %v391 = vunpack.c.l.b16 %v73
  %v392 = vunpack.c.l.b16 %v74
  %v393 = vunpack.c.l.b16 %v75
  %v394 = vunpack.c.l.b16 %v76
  %v395 = vunpack.c.l.b16 %v77
  %v396 = vunpack.c.l.b16 %v78
  %v397 = vunpack.c.l.b16 %v79
  %v398 = vunpack.c.l.b16 %v80
  %v399 = vunpack.c.l.b16 %v81
  %v400 = vunpack.c.l.b16 %v82
  %v401 = vunpack.c.l.b16 %v83
  %v402 = vunpack.c.l.b16 %v84
  %v403 = vunpack.c.l.b16 %v85
  %v404 = vunpack.c.l.b16 %v86
  %v405 = vunpack.c.l.b16 %v87
  %v406 = vunpack.c.l.b16 %v88
  %v407 = vunpack.c.l.b16 %v89
  %v408 = vunpack.c.l.b16 %v90
  %v409 = vunpack.c.l.b16 %v91
  %v410 = vunpack.c.l.b16 %v92
  %v411 = vunpack.c.l.b16 %v93
  %v412 = vunpack.c.l.b16 %v94
  %v413 = vunpack.c.l.b16 %v95
  %v414 = vunpack.c.l.b16 %v96
  %v415 = vunpack.c.l.b16 %v97
  %v416 = vunpack.c.l.b16 %v98
  %v417 = vunpack.c.l.b16 %v99
  %v418 = vunpack.c.l.b16 %v100
  %v419 = vunpack.c.l.b16 %v101
  %v420 = vunpack.c.l.b16 %v102
  %v421 = vunpack.c.l.b16 %v103
  %v422 = vunpack.c.l.b16 %v104
  %v423 = vunpack.c.l.b16 %v105
  %v424 = vunpack.c.l.b16 %v106
  %v425 = vunpack.c.l.b16 %v107
  %v426 = vunpack.c.l.b16 %v108
  %v427 = vunpack.c.l.b16 %v109
  %v428 = vunpack.c.l.b16 %v110
  %v429 = vunpack.c.l.b16 %v111
  %v430 = vunpack.c.l.b16 %v112
  %v431 = vunpack.c.l.b16 %v113
  %v432 = vunpack.c.l.b16 %v114
  %v433 = vunpack.c.l.b16 %v115
  %v434 = vunpack.c.l.b16 %v116
  %v435 = vunpack.c.l.b16 %v117
  %v436 = vunpack.c.l.b16 %v118
  %v437 = vunpack.c.l.b16 %v119
  %v438 = vunpack.c.l.b16 %v120
  %v439 = vunpack.c.l.b16 %v121
  %v440 = vunpack.c.l.b16 %v122
  %v441 = vunpack.c.l.b16 %v123
  %v442 = vunpack.c.l.b16 %v124
  %v443 = vunpack.c.l.b16 %v125
  %v444 = vunpack.c.l.b16 %v126
  %v445 = vunpack.c.l.b16 %v127
  %v446 = vunpack.c.l.b16 %v128
  %v447 = vunpack.c.l.b16 %v129
  %v448 = vunpack.c.l.b16 %v130
  %v449 = vunpack.c.l.b16 %v131
  %v450 = vpack.c.b16 %v379, %v378
  %v451 = vpack.c.b16 %v381, %v380
  %v452 = vpack.c.b16 %v383, %v382
  %v453 = vpack.c.b16 %v385, %v384
  %v454 = vpack.c.b16 %v387, %v386
  %v455 = vpack.c.b16 %v389, %v388
  %v456 = vpack.c.b16 %v391, %v390
  %v457 = vpack.c.b16 %v393, %v392
  %v458 = vpack.c.b16 %v395, %v394
  %v459 = vpack.c.b16 %v397, %v396
  %v460 = vpack.c.b16 %v399, %v398
  %v461 = vpack.c.b16 %v401, %v400
  %v462 = vpack.c.b16 %v403, %v402
  %v463 = vpack.c.b16 %v405, %v404
  %v464 = vpack.c.b16 %v407, %v406
  %v465 = vpack.c.b16 %v409, %v408
  %v466 = vpack.c.b16 %v411, %v410
  %v467 = vpack.c.b16 %v413, %v412
  %v468 = vpack.c.b16 %v415, %v414
  %v469 = vpack.c.b16 %v417, %v416
  %v470 = vpack.c.b16 %v419, %v418
  %v471 = vpack.c.b16 %v421, %v420
  %v472 = vpack.c.b16 %v423, %v422
  %v473 = vpack.c.b16 %v425, %v424
  %v474 = vpack.c.b16 %v427, %v426
  %v475 = vpack.c.b16 %v429, %v428
  %v476 = vpack.c.b16 %v431, %v430
  %v477 = vpack.c.b16 %v433, %v432
  %v478 = vpack.c.b16 %v435, %v434
  %v479 = vpack.c.b16 %v437, %v436
  %v480 = vpack.c.b16 %v439, %v438
  %v481 = vpack.c.b16 %v441, %v440
  %v482 = vpack.c.b16 %v443, %v442
  %v483 = vpack.c.b16 %v445, %v444
  %v484 = vpack.c.b16 %v447, %v446
  %v485 = vpack.c.b16 %v449, %v448
  %vm522 = vcmask 523264
  %v524 = vsel %vm522, %v247, 0
  %v527 = vsel %vm522, %v252, 0
  %v530 = vsel %vm522, %v257, 0
  %v533 = vsel %vm522, %v262, 0
  %v536 = vsel %vm522, %v267, 0
  %v539 = vsel %vm522, %v272, 0
  %v542 = vsel %vm522, %v277, 0
  %544 = vmatprep.subr.bf16.mxu0 0
  %545 = vmatpush1.bf16.msra.mxu0 %v457
  %546 = vmatprep.subr.bf16.mxu0 0
  %547 = vmatpush1.bf16.msra.mxu0 %v456
  %548 = vmatprep.subr.bf16.mxu0 0
  %549 = vmatpush1.bf16.msra.mxu0 %v455
  %550 = vmatprep.subr.bf16.mxu0 0
  %551 = vmatpush1.bf16.msra.mxu0 %v454
  %552 = vmatprep.subr.bf16.mxu0 0
  %553 = vmatpush1.bf16.msra.mxu0 %v453
  %554 = vmatprep.subr.bf16.mxu0 0
  %555 = vmatpush1.bf16.msra.mxu0 %v452
  %556 = vmatprep.subr.bf16.mxu0 0
  %557 = vmatpush1.bf16.msra.mxu0 %v451
  %558 = vmatprep.subr.bf16.mxu0 0
  %559 = vmatpush1.bf16.msra.mxu0 %v450
  %560 = vmatprep.subr.bf16.mxu0 0
  %561 = vmatpush2.bf16.msra.mxu0 %v465
  %562 = vmatprep.subr.bf16.mxu0 0
  %563 = vmatpush2.bf16.msra.mxu0 %v464
  %564 = vmatprep.subr.bf16.mxu0 0
  %565 = vmatpush2.bf16.msra.mxu0 %v463
  %566 = vmatprep.subr.bf16.mxu0 0
  %567 = vmatpush2.bf16.msra.mxu0 %v462
  %568 = vmatprep.subr.bf16.mxu0 0
  %569 = vmatpush2.bf16.msra.mxu0 %v461
  %570 = vmatprep.subr.bf16.mxu0 0
  %571 = vmatpush2.bf16.msra.mxu0 %v460
  %572 = vmatprep.subr.bf16.mxu0 0
  %573 = vmatpush2.bf16.msra.mxu0 %v459
  %574 = vmatprep.subr.bf16.mxu0 0
  %575 = vmatpush2.bf16.msra.mxu0 %v458
  %576 = vmatprep.mubr.bf16.mxu0 %v244
  %577 = vmatmul.mubr.bf16.gmra.mxu0 %v243
  %v578 = vpop.f32.mrf.mxu0
  %v579 = vadd.f32 %v137, %v578
  %v580 = vpop.f32.mrf.mxu0
  %v581 = vpop.f32.mrf.mxu0
  %v582 = vadd.f32 %v137, %v581
  %v583 = vpop.f32.mrf.mxu0
  %584 = vmatprep.mubr.bf16.mxu0 %v249
  %585 = vmatmul.mubr.bf16.gmra.mxu0 %v248
  %v586 = vpop.f32.mrf.mxu0
  %v587 = vadd.f32 %v137, %v586
  %v588 = vpop.f32.mrf.mxu0
  %v589 = vpop.f32.mrf.mxu0
  %v590 = vadd.f32 %v137, %v589
  %v591 = vpop.f32.mrf.mxu0
  %592 = vmatprep.mubr.bf16.mxu0 %v254
  %593 = vmatmul.mubr.bf16.gmra.mxu0 %v253
  %v594 = vpop.f32.mrf.mxu0
  %v595 = vadd.f32 %v137, %v594
  %v596 = vpop.f32.mrf.mxu0
  %v597 = vpop.f32.mrf.mxu0
  %v598 = vadd.f32 %v137, %v597
  %v599 = vpop.f32.mrf.mxu0
  %600 = vmatprep.mubr.bf16.mxu0 %v259
  %601 = vmatmul.mubr.bf16.gmra.mxu0 %v258
  %v602 = vpop.f32.mrf.mxu0
  %v603 = vadd.f32 %v137, %v602
  %v604 = vpop.f32.mrf.mxu0
  %v605 = vpop.f32.mrf.mxu0
  %v606 = vadd.f32 %v137, %v605
  %v607 = vpop.f32.mrf.mxu0
  %608 = vmatprep.mubr.bf16.mxu0 %v264
  %609 = vmatmul.mubr.bf16.gmra.mxu0 %v263
  %v610 = vpop.f32.mrf.mxu0
  %v611 = vadd.f32 %v137, %v610
  %v612 = vpop.f32.mrf.mxu0
  %v613 = vpop.f32.mrf.mxu0
  %v614 = vadd.f32 %v137, %v613
  %v615 = vpop.f32.mrf.mxu0
  %616 = vmatprep.mubr.bf16.mxu0 %v269
  %617 = vmatmul.mubr.bf16.gmra.mxu0 %v268
  %v618 = vpop.f32.mrf.mxu0
  %v619 = vadd.f32 %v137, %v618
  %v620 = vpop.f32.mrf.mxu0
  %v621 = vpop.f32.mrf.mxu0
  %v622 = vadd.f32 %v137, %v621
  %v623 = vpop.f32.mrf.mxu0
  %624 = vmatprep.mubr.bf16.mxu0 %v274
  %625 = vmatmul.mubr.bf16.gmra.mxu0 %v273
  %v626 = vpop.f32.mrf.mxu0
  %v627 = vadd.f32 %v137, %v626
  %v628 = vpop.f32.mrf.mxu0
  %v629 = vpop.f32.mrf.mxu0
  %v630 = vpop.f32.mrf.mxu0
  %631 = vdwg.mxu0
  %632 = vmatprep.subr.bf16.mxu0 0
  %633 = vmatpush1.bf16.msra.mxu0 %v473
  %634 = vmatprep.subr.bf16.mxu0 0
  %635 = vmatpush1.bf16.msra.mxu0 %v472
  %636 = vmatprep.subr.bf16.mxu0 0
  %637 = vmatpush1.bf16.msra.mxu0 %v471
  %638 = vmatprep.subr.bf16.mxu0 0
  %639 = vmatpush1.bf16.msra.mxu0 %v470
  %640 = vmatprep.subr.bf16.mxu0 0
  %641 = vmatpush1.bf16.msra.mxu0 %v469
  %642 = vmatprep.subr.bf16.mxu0 0
  %643 = vmatpush1.bf16.msra.mxu0 %v468
  %644 = vmatprep.subr.bf16.mxu0 0
  %645 = vmatpush1.bf16.msra.mxu0 %v467
  %646 = vmatprep.subr.bf16.mxu0 0
  %647 = vmatpush1.bf16.msra.mxu0 %v466
  %648 = vmatprep.subr.bf16.mxu0 0
  %649 = vmatpush2.bf16.msra.mxu0 %v481
  %650 = vmatprep.subr.bf16.mxu0 0
  %651 = vmatpush2.bf16.msra.mxu0 %v480
  %652 = vmatprep.subr.bf16.mxu0 0
  %653 = vmatpush2.bf16.msra.mxu0 %v479
  %654 = vmatprep.subr.bf16.mxu0 0
  %655 = vmatpush2.bf16.msra.mxu0 %v478
  %656 = vmatprep.subr.bf16.mxu0 0
  %657 = vmatpush2.bf16.msra.mxu0 %v477
  %658 = vmatprep.subr.bf16.mxu0 0
  %659 = vmatpush2.bf16.msra.mxu0 %v476
  %660 = vmatprep.subr.bf16.mxu0 0
  %661 = vmatpush2.bf16.msra.mxu0 %v475
  %662 = vmatprep.subr.bf16.mxu0 0
  %663 = vmatpush2.bf16.msra.mxu0 %v474
  %664 = vmatprep.mubr.bf16.mxu0 %v246
  %665 = vmatmul.mubr.bf16.gmra.mxu0 %v245
  %v666 = vpop.f32.mrf.mxu0
  %v667 = vadd.f32 %v579, %v666
  %v668 = vpop.f32.mrf.mxu0
  %v669 = vpop.f32.mrf.mxu0
  %v670 = vadd.f32 %v582, %v669
  %v671 = vpop.f32.mrf.mxu0
  %672 = vmatprep.mubr.bf16.mxu0 %v251
  %673 = vmatmul.mubr.bf16.gmra.mxu0 %v250
  %v674 = vpop.f32.mrf.mxu0
  %v675 = vadd.f32 %v587, %v674
  %v676 = vpop.f32.mrf.mxu0
  %v677 = vpop.f32.mrf.mxu0
  %v678 = vadd.f32 %v590, %v677
  %v679 = vpop.f32.mrf.mxu0
  %680 = vmatprep.mubr.bf16.mxu0 %v256
  %681 = vmatmul.mubr.bf16.gmra.mxu0 %v255
  %v682 = vpop.f32.mrf.mxu0
  %v683 = vadd.f32 %v595, %v682
  %v684 = vpop.f32.mrf.mxu0
  %v685 = vpop.f32.mrf.mxu0
  %v686 = vadd.f32 %v598, %v685
  %v687 = vpop.f32.mrf.mxu0
  %688 = vmatprep.mubr.bf16.mxu0 %v261
  %689 = vmatmul.mubr.bf16.gmra.mxu0 %v260
  %v690 = vpop.f32.mrf.mxu0
  %v691 = vadd.f32 %v603, %v690
  %v692 = vpop.f32.mrf.mxu0
  %v693 = vpop.f32.mrf.mxu0
  %v694 = vadd.f32 %v606, %v693
  %v695 = vpop.f32.mrf.mxu0
  %696 = vmatprep.mubr.bf16.mxu0 %v266
  %697 = vmatmul.mubr.bf16.gmra.mxu0 %v265
  %v698 = vpop.f32.mrf.mxu0
  %v699 = vadd.f32 %v611, %v698
  %v700 = vpop.f32.mrf.mxu0
  %v701 = vpop.f32.mrf.mxu0
  %v702 = vadd.f32 %v614, %v701
  %v703 = vpop.f32.mrf.mxu0
  %704 = vmatprep.mubr.bf16.mxu0 %v271
  %705 = vmatmul.mubr.bf16.gmra.mxu0 %v270
  %v706 = vpop.f32.mrf.mxu0
  %v707 = vadd.f32 %v619, %v706
  %v708 = vpop.f32.mrf.mxu0
  %v709 = vpop.f32.mrf.mxu0
  %v710 = vadd.f32 %v622, %v709
  %v711 = vpop.f32.mrf.mxu0
  %712 = vmatprep.mubr.bf16.mxu0 %v276
  %713 = vmatmul.mubr.bf16.gmra.mxu0 %v275
  %v714 = vpop.f32.mrf.mxu0
  %v715 = vadd.f32 %v627, %v714
  %v716 = vpop.f32.mrf.mxu0
  %v717 = vpop.f32.mrf.mxu0
  %v718 = vpop.f32.mrf.mxu0
  %719 = vdwg.mxu0
  %720 = vmatprep.subr.bf16.mxu0 0
  %721 = vmatpush1.bf16.msra.mxu0 0
  %722 = vmatprep.subr.bf16.mxu0 0
  %723 = vmatpush1.bf16.msra.mxu0 0
  %724 = vmatprep.subr.bf16.mxu0 0
  %725 = vmatpush1.bf16.msra.mxu0 0
  %726 = vmatprep.subr.bf16.mxu0 0
  %727 = vmatpush1.bf16.msra.mxu0 0
  %728 = vmatprep.subr.bf16.mxu0 0
  %729 = vmatpush1.bf16.msra.mxu0 %v485
  %730 = vmatprep.subr.bf16.mxu0 0
  %731 = vmatpush1.bf16.msra.mxu0 %v484
  %732 = vmatprep.subr.bf16.mxu0 0
  %733 = vmatpush1.bf16.msra.mxu0 %v483
  %734 = vmatprep.subr.bf16.mxu0 0
  %735 = vmatpush1.bf16.msra.mxu0 %v482
  %736 = vmatprep.subr.bf16.mxu0 0
  %737 = vmatpush2.bf16.msra.mxu0 0
  %738 = vmatprep.subr.bf16.mxu0 0
  %739 = vmatpush2.bf16.msra.mxu0 0
  %740 = vmatprep.subr.bf16.mxu0 0
  %741 = vmatpush2.bf16.msra.mxu0 0
  %742 = vmatprep.subr.bf16.mxu0 0
  %743 = vmatpush2.bf16.msra.mxu0 0
  %744 = vmatprep.subr.bf16.mxu0 0
  %745 = vmatpush2.bf16.msra.mxu0 0
  %746 = vmatprep.subr.bf16.mxu0 0
  %747 = vmatpush2.bf16.msra.mxu0 0
  %748 = vmatprep.subr.bf16.mxu0 0
  %749 = vmatpush2.bf16.msra.mxu0 0
  %750 = vmatprep.subr.bf16.mxu0 0
  %751 = vmatpush2.bf16.msra.mxu0 0
  %752 = vmatprep.mubr.bf16.mxu0 0
  %753 = vmatmul.mubr.bf16.gmra.mxu0 %v524
  %v754 = vpop.f32.mrf.mxu0
  %v755 = vadd.f32 %v667, %v754
  %v756 = vpop.f32.mrf.mxu0
  %v757 = vpop.f32.mrf.mxu0
  %v758 = vadd.f32 %v670, %v757
  %v759 = vpop.f32.mrf.mxu0
  %760 = vmatprep.mubr.bf16.mxu0 0
  %761 = vmatmul.mubr.bf16.gmra.mxu0 %v527
  %v762 = vpop.f32.mrf.mxu0
  %v763 = vadd.f32 %v675, %v762
  %v764 = vpop.f32.mrf.mxu0
  %v765 = vpop.f32.mrf.mxu0
  %v766 = vadd.f32 %v678, %v765
  %v767 = vpop.f32.mrf.mxu0
  %768 = vmatprep.mubr.bf16.mxu0 0
  %769 = vmatmul.mubr.bf16.gmra.mxu0 %v530
  %v770 = vpop.f32.mrf.mxu0
  %v771 = vadd.f32 %v683, %v770
  %v772 = vpop.f32.mrf.mxu0
  %v773 = vpop.f32.mrf.mxu0
  %v774 = vadd.f32 %v686, %v773
  %v775 = vpop.f32.mrf.mxu0
  %776 = vmatprep.mubr.bf16.mxu0 0
  %777 = vmatmul.mubr.bf16.gmra.mxu0 %v533
  %v778 = vpop.f32.mrf.mxu0
  %v779 = vadd.f32 %v691, %v778
  %v780 = vpop.f32.mrf.mxu0
  %v781 = vpop.f32.mrf.mxu0
  %v782 = vadd.f32 %v694, %v781
  %v783 = vpop.f32.mrf.mxu0
  %784 = vmatprep.mubr.bf16.mxu0 0
  %785 = vmatmul.mubr.bf16.gmra.mxu0 %v536
  %v786 = vpop.f32.mrf.mxu0
  %v787 = vadd.f32 %v699, %v786
  %v788 = vpop.f32.mrf.mxu0
  %v789 = vpop.f32.mrf.mxu0
  %v790 = vadd.f32 %v702, %v789
  %v791 = vpop.f32.mrf.mxu0
  %792 = vmatprep.mubr.bf16.mxu0 0
  %793 = vmatmul.mubr.bf16.gmra.mxu0 %v539
  %v794 = vpop.f32.mrf.mxu0
  %v795 = vadd.f32 %v707, %v794
  %v796 = vpop.f32.mrf.mxu0
  %v797 = vpop.f32.mrf.mxu0
  %v798 = vadd.f32 %v710, %v797
  %v799 = vpop.f32.mrf.mxu0
  %800 = vmatprep.mubr.bf16.mxu0 0
  %801 = vmatmul.mubr.bf16.gmra.mxu0 %v542
  %v802 = vpop.f32.mrf.mxu0
  %v803 = vadd.f32 %v715, %v802
  %v804 = vpop.f32.mrf.mxu0
  %v805 = vpop.f32.mrf.mxu0
  %v806 = vpop.f32.mrf.mxu0
  %807 = vdwg.mxu0
  %v808 = vsel %vm522, %v755, 0.0
  %v809 = vsel %vm522, %v758, 0.0
  %v810 = vadd.f32 %v808, %v809
  %v811 = vsel %vm522, %v763, 0.0
  %v812 = vadd.f32 %v810, %v811
  %v813 = vsel %vm522, %v766, 0.0
  %v814 = vadd.f32 %v812, %v813
  %v815 = vsel %vm522, %v771, 0.0
  %v816 = vadd.f32 %v814, %v815
  %v817 = vsel %vm522, %v774, 0.0
  %v818 = vadd.f32 %v816, %v817
  %v819 = vsel %vm522, %v779, 0.0
  %v820 = vadd.f32 %v818, %v819
  %v821 = vsel %vm522, %v782, 0.0
  %v822 = vadd.f32 %v820, %v821
  %v823 = vsel %vm522, %v787, 0.0
  %v824 = vadd.f32 %v822, %v823
  %v825 = vsel %vm522, %v790, 0.0
  %v826 = vadd.f32 %v824, %v825
  %v827 = vsel %vm522, %v795, 0.0
  %v828 = vadd.f32 %v826, %v827
  %v829 = vsel %vm522, %v798, 0.0
  %v830 = vadd.f32 %v828, %v829
  %vm831 = vcmask 517120
  %v832 = vsel %vm831, %v803, 0.0
  %v833 = vadd.f32 %v830, %v832
  %v834 = vrot.slane %v833, 4
  %v835 = vadd.f32 %v833, %v834
  %v836 = vrot.slane %v835, 2
  %v837 = vadd.f32 %v835, %v836
  %v838 = vrot.slane %v837, 1
  %v839 = vadd.f32 %v837, %v838
  %v840 = vrcp.pop 98.0
  %v841 = vmul.f32 %v839, %v840
  %v842 = vsub.f32 %v755, %v841
  %v843 = vsub.f32 %v758, %v841
  %v844 = vsub.f32 %v763, %v841
  %v845 = vsub.f32 %v766, %v841
  %v846 = vsub.f32 %v771, %v841
  %v847 = vsub.f32 %v774, %v841
  %v848 = vsub.f32 %v779, %v841
  %v849 = vsub.f32 %v782, %v841
  %v850 = vsub.f32 %v787, %v841
  %v851 = vsub.f32 %v790, %v841
  %v852 = vsub.f32 %v795, %v841
  %v853 = vsub.f32 %v798, %v841
  %v854 = vsub.f32 %v803, %v841
  %v855 = vmul.f32 %v842, %v842
  %v856 = vmul.f32 %v843, %v843
  %v857 = vmul.f32 %v844, %v844
  %v858 = vmul.f32 %v845, %v845
  %v859 = vmul.f32 %v846, %v846
  %v860 = vmul.f32 %v847, %v847
  %v861 = vmul.f32 %v848, %v848
  %v862 = vmul.f32 %v849, %v849
  %v863 = vmul.f32 %v850, %v850
  %v864 = vmul.f32 %v851, %v851
  %v865 = vmul.f32 %v852, %v852
  %v866 = vmul.f32 %v853, %v853
  %v867 = vmul.f32 %v854, %v854
  %v868 = vsel %vm522, %v855, 0.0
  %v869 = vsel %vm522, %v856, 0.0
  %v870 = vadd.f32 %v868, %v869
  %v871 = vsel %vm522, %v857, 0.0
  %v872 = vadd.f32 %v870, %v871
  %v873 = vsel %vm522, %v858, 0.0
  %v874 = vadd.f32 %v872, %v873
  %v875 = vsel %vm522, %v859, 0.0
  %v876 = vadd.f32 %v874, %v875
  %v877 = vsel %vm522, %v860, 0.0
  %v878 = vadd.f32 %v876, %v877
  %v879 = vsel %vm522, %v861, 0.0
  %v880 = vadd.f32 %v878, %v879
  %v881 = vsel %vm522, %v862, 0.0
  %v882 = vadd.f32 %v880, %v881
  %v883 = vsel %vm522, %v863, 0.0
  %v884 = vadd.f32 %v882, %v883
  %v885 = vsel %vm522, %v864, 0.0
  %v886 = vadd.f32 %v884, %v885
  %v887 = vsel %vm522, %v865, 0.0
  %v888 = vadd.f32 %v886, %v887
  %v889 = vsel %vm522, %v866, 0.0
  %v890 = vadd.f32 %v888, %v889
  %v891 = vsel %vm831, %v867, 0.0
  %v892 = vadd.f32 %v890, %v891
  %v893 = vrot.slane %v892, 4
  %v894 = vadd.f32 %v892, %v893
  %v895 = vrot.slane %v894, 2
  %v896 = vadd.f32 %v894, %v895
  %v897 = vrot.slane %v896, 1
  %v898 = vadd.f32 %v896, %v897
  %v899 = vmul.f32 %v898, %v840
  %v900 = vld [vmem:[%s3] sm:$0x1]
  %v901 = vadd.f32 %v899, 1e-05
  %v902 = vrsqrt.pop %v901
  %v903 = vmul.f32 %v900, %v902
  %v905 = vlaneseq
  %v906 = vshrl.u32 %v905, 7
  %v907 = vsub.s32 0, %v906
  %v908 = vrot.slane %v903, %v907
  %v910 = vmul.f32 %v842, %v908
  %v911 = vmul.f32 %v843, %v908
  %v912 = vmul.f32 %v844, %v908
  %v913 = vmul.f32 %v845, %v908
  %v914 = vmul.f32 %v846, %v908
  %v915 = vmul.f32 %v847, %v908
  %v916 = vmul.f32 %v848, %v908
  %v917 = vmul.f32 %v849, %v908
  %v918 = vmul.f32 %v850, %v908
  %v919 = vmul.f32 %v851, %v908
  %v920 = vmul.f32 %v852, %v908
  %v921 = vmul.f32 %v853, %v908
  %v922 = vmul.f32 %v854, %v908
  %v923 = vld [vmem:[%s4] sm:$0x1]
  %v925 = vlaneseq
  %v926 = vshrl.u32 %v925, 7
  %v927 = vsub.s32 0, %v926
  %v928 = vrot.slane %v923, %v927
  %v930 = vadd.f32 %v910, %v928
  %v931 = vadd.f32 %v911, %v928
  %v932 = vadd.f32 %v912, %v928
  %v933 = vadd.f32 %v913, %v928
  %v934 = vadd.f32 %v914, %v928
  %v935 = vadd.f32 %v915, %v928
  %v936 = vadd.f32 %v916, %v928
  %v937 = vadd.f32 %v917, %v928
  %v938 = vadd.f32 %v918, %v928
  %v939 = vadd.f32 %v919, %v928
  %v940 = vadd.f32 %v920, %v928
  %v941 = vadd.f32 %v921, %v928
  %v942 = vadd.f32 %v922, %v928
  %v943 = vmul.f32 %v930, 0.01
  %v944 = vmul.f32 %v931, 0.01
  %v945 = vmul.f32 %v932, 0.01
  %v946 = vmul.f32 %v933, 0.01
  %v947 = vmul.f32 %v934, 0.01
  %v948 = vmul.f32 %v935, 0.01
  %v949 = vmul.f32 %v936, 0.01
  %v950 = vmul.f32 %v937, 0.01
  %v951 = vmul.f32 %v938, 0.01
  %v952 = vmul.f32 %v939, 0.01
  %v953 = vmul.f32 %v940, 0.01
  %v954 = vmul.f32 %v941, 0.01
  %v955 = vmul.f32 %v942, 0.01
  %v956 = vmax.f32 %v930, %v943
  %v957 = vmax.f32 %v931, %v944
  %v958 = vmax.f32 %v932, %v945
  %v959 = vmax.f32 %v933, %v946
  %v960 = vmax.f32 %v934, %v947
  %v961 = vmax.f32 %v935, %v948
  %v962 = vmax.f32 %v936, %v949
  %v963 = vmax.f32 %v937, %v950
  %v964 = vmax.f32 %v938, %v951
  %v965 = vmax.f32 %v939, %v952
  %v966 = vmax.f32 %v940, %v953
  %v967 = vmax.f32 %v941, %v954
  %v968 = vmax.f32 %v942, %v955
  %v969 = vpack.c.bf16 %v957, %v956
  %v970 = vpack.c.bf16 %v959, %v958
  %v971 = vpack.c.bf16 %v961, %v960
  %v972 = vpack.c.bf16 %v963, %v962
  %v973 = vpack.c.bf16 %v965, %v964
  %v974 = vpack.c.bf16 %v967, %v966
  %v975 = vpack.c.bf16 %v968, %v968
  %v983 = vunpack.c.l.b16 %v969
  %v984 = vunpack.c.h.b16 %v969
  %v985 = vunpack.c.l.b16 %v970
  %v986 = vunpack.c.h.b16 %v970
  %v987 = vunpack.c.l.b16 %v971
  %v988 = vunpack.c.h.b16 %v971
  %v989 = vunpack.c.l.b16 %v972
  %v990 = vunpack.c.h.b16 %v972
  %v991 = vunpack.c.l.b16 %v973
  %v992 = vunpack.c.h.b16 %v973
  %v993 = vunpack.c.l.b16 %v974
  %v994 = vunpack.c.h.b16 %v974
  %v995 = vunpack.c.l.b16 %v975
  %v996 = vpack.c.b16 %v983, %v983
  %v997 = vpack.c.b16 %v984, %v984
  %v998 = vpack.c.b16 %v985, %v985
  %v999 = vpack.c.b16 %v986, %v986
  %v1000 = vpack.c.b16 %v987, %v987
  %v1001 = vpack.c.b16 %v988, %v988
  %v1002 = vpack.c.b16 %v989, %v989
  %v1003 = vpack.c.b16 %v990, %v990
  %v1004 = vpack.c.b16 %v991, %v991
  %v1005 = vpack.c.b16 %v992, %v992
  %v1006 = vpack.c.b16 %v993, %v993
  %v1007 = vpack.c.b16 %v994, %v994
  %v1008 = vpack.c.b16 %v995, %v995
  %vm1022 = vcmask 519168
  %1023 = vst.msk [vmem:[%s5] sm:$0xf] %vm1022, %v996
  %1024 = vst.msk [vmem:[%s5 + $0x4] sm:$0xf] %vm1022, %v997
  %1025 = vst.msk [vmem:[%s5 + $0x8] sm:$0xf] %vm1022, %v998
  %1026 = vst.msk [vmem:[%s5 + $0xc] sm:$0xf] %vm1022, %v999
  %1027 = vst.msk [vmem:[%s5 + $0x10] sm:$0xf] %vm1022, %v1000
  %1028 = vst.msk [vmem:[%s5 + $0x14] sm:$0xf] %vm1022, %v1001
  %1029 = vst.msk [vmem:[%s5 + $0x18] sm:$0xf] %vm1022, %v1002
  %1030 = vst.msk [vmem:[%s5 + $0x1c] sm:$0xf] %vm1022, %v1003
  %1031 = vst.msk [vmem:[%s5 + $0x20] sm:$0xf] %vm1022, %v1004
  %1032 = vst.msk [vmem:[%s5 + $0x24] sm:$0xf] %vm1022, %v1005
  %1033 = vst.msk [vmem:[%s5 + $0x28] sm:$0xf] %vm1022, %v1006
  %1034 = vst.msk [vmem:[%s5 + $0x2c] sm:$0xf] %vm1022, %v1007
  %vm1035 = vcmask 516096
  %1036 = vst.msk [vmem:[%s5 + $0x30] sm:$0x1] %vm1035, %v1008
  // Predicated region
  $region22: #{_lambda_.4} parent=0 // pred_check
    _
  $region23: #{_lambda_.4} parent=0 // pred_check_branch
    %1038 = sbr.rel (0) target = $region25
  $region24: #{_lambda_.4} parent=0 // pred_region
    _
  $region25: #{_lambda_.4} parent=0 // pred_fallthru
    _
  // Predicated region
  $region26: #{_lambda_.4} parent=0 // pred_check
    _
  $region27: #{_lambda_.4} parent=0 // pred_check_branch
    %1040 = sbr.rel (0) target = $region29
  $region28: #{_lambda_.4} parent=0 // pred_region
    _
  $region29: #{_lambda_.4} parent=0 // pred_fallthru
    _

// kernel: _lambda_.5
$region0: #{_lambda_.5}
  #allocation0 [shape = 'u32[]', space=smem, size = 0x4, offset = 0x4, fixed_abs, tag = 'smem constant byte address 0x4 - core index']
  #allocation1 [shape = 'u32[144,128]{1,0:T(1,128)}', space=vmem, size = 0x12000, scoped, tag = 'internal scratch']
  #allocation2 [shape = 'f32[1,1]{1,0:T(1,128)S(1)}', space=vmem, size = 0x200, scoped, tag = 'scoped memory for _lambda_.5']
  %s0 = inlined_call_operand.vmem [shape: bf16[18,576], index: 0, kind: input, shape index: {}]
  %s1 = inlined_call_operand.vmem [shape: bf16[576,128], index: 1, kind: input, shape index: {}]
  %s2 = inlined_call_operand.vmem [shape: f32[1,128], index: 2, kind: input, shape index: {}]
  %s3 = inlined_call_operand.vmem [shape: f32[1,128], index: 3, kind: input, shape index: {}]
  %s4 = inlined_call_operand.vmem [shape: f32[1,128], index: 4, kind: input, shape index: {}]
  %s5 = inlined_call_operand.vmem [shape: f32[18,128], index: 5, kind: input, shape index: {}]
  %s6 = inlined_call_operand.vmem [shape: f32[2,18], index: 6, kind: input, shape index: {}]
  %s7 = inlined_call_operand.<no memory space> [shape: f32[1,1], index: 7, kind: input, shape index: {}]
  %s8 = inlined_call_operand.vmem [shape: f32[2,128], index: 8, kind: output, shape index: {}]
  %s9 = sld [smem:[#allocation0]]
  $region42: #{_lambda_.5} parent=0
    _
  %s11 = ssub.s32 1, %s9
  %s12 = scalar_select 0, %s11, %s9
  %v13 = vstv %s7
  %14 = vst [vmem:[#allocation2] sm:$0x1] %v13
  // Predicated region
  $region2: #{_lambda_.5} parent=0 // pred_check
    _
  $region3: #{_lambda_.5} parent=0 // pred_check_branch
    %16 = sbr.rel (0) target = $region5
  $region4: #{_lambda_.5} parent=0 // pred_region
    _
  $region5: #{_lambda_.5} parent=0 // pred_fallthru
    _
  // Predicated region
  $region6: #{_lambda_.5} parent=0 // pred_check
    _
  $region7: #{_lambda_.5} parent=0 // pred_check_branch
    %18 = sbr.rel (0) target = $region9
  $region8: #{_lambda_.5} parent=0 // pred_region
    _
  $region9: #{_lambda_.5} parent=0 // pred_fallthru
    _
  // Predicated region
  $region10: #{_lambda_.5} parent=0 // pred_check
    _
  $region11: #{_lambda_.5} parent=0 // pred_check_branch
    %20 = sbr.rel (0) target = $region13
  $region12: #{_lambda_.5} parent=0 // pred_region
    _
  $region13: #{_lambda_.5} parent=0 // pred_fallthru
    _
  // Predicated region
  $region14: #{_lambda_.5} parent=0 // pred_check
    _
  $region15: #{_lambda_.5} parent=0 // pred_check_branch
    %22 = sbr.rel (0) target = $region17
  $region16: #{_lambda_.5} parent=0 // pred_region
    _
  $region17: #{_lambda_.5} parent=0 // pred_fallthru
    _
  // Predicated region
  $region18: #{_lambda_.5} parent=0 // pred_check
    _
  $region19: #{_lambda_.5} parent=0 // pred_check_branch
    %24 = sbr.rel (0) target = $region21
  $region20: #{_lambda_.5} parent=0 // pred_region
    _
  $region21: #{_lambda_.5} parent=0 // pred_fallthru
    _
  // Predicated region
  $region22: #{_lambda_.5} parent=0 // pred_check
    _
  $region23: #{_lambda_.5} parent=0 // pred_check_branch
    %26 = sbr.rel (0) target = $region25
  $region24: #{_lambda_.5} parent=0 // pred_region
    _
  $region25: #{_lambda_.5} parent=0 // pred_fallthru
    _
  // Predicated region
  $region26: #{_lambda_.5} parent=0 // pred_check
    _
  $region27: #{_lambda_.5} parent=0 // pred_check_branch
    %28 = sbr.rel (0) target = $region29
  $region28: #{_lambda_.5} parent=0 // pred_region
    _
  $region29: #{_lambda_.5} parent=0 // pred_fallthru
    _
  // Predicated region
  $region30: #{_lambda_.5} parent=0 // pred_check
    _
  $region31: #{_lambda_.5} parent=0 // pred_check_branch
    %30 = sbr.rel (0) target = $region33
  $region32: #{_lambda_.5} parent=0 // pred_region
    _
  $region33: #{_lambda_.5} parent=0 // pred_fallthru
    _
  %v32 = vld [vmem:[%s0] sm:$0xff]
  %v33 = vld [vmem:[%s0 + $0x8] sm:$0xff]
  %v34 = vld [vmem:[%s0 + $0x10] sm:$0xf]
  %v35 = vld [vmem:[%s0 + $0x14] sm:$0xff]
  %v36 = vld [vmem:[%s0 + $0x1c] sm:$0xff]
  %v37 = vld [vmem:[%s0 + $0x24] sm:$0xf]
  %v38 = vld [vmem:[%s0 + $0x28] sm:$0x11]
  %v39 = vld [vmem:[%s0 + $0x30] sm:$0x11]
  %v40 = vld [vmem:[%s0 + $0x38] sm:$0x1]
  %v41 = vld [vmem:[%s1] sm:$0xf]
  %v42 = vld [vmem:[%s1 + $0x4] sm:$0xf]
  %v43 = vld [vmem:[%s1 + $0x8] sm:$0xf]
  %v44 = vld [vmem:[%s1 + $0xc] sm:$0xf]
  %v45 = vld [vmem:[%s1 + $0x10] sm:$0xf]
  %v46 = vld [vmem:[%s1 + $0x14] sm:$0xf]
  %v47 = vld [vmem:[%s1 + $0x18] sm:$0xf]
  %v48 = vld [vmem:[%s1 + $0x1c] sm:$0xf]
  %v49 = vld [vmem:[%s1 + $0x20] sm:$0xf]
  %v50 = vld [vmem:[%s1 + $0x24] sm:$0xf]
  %v51 = vld [vmem:[%s1 + $0x28] sm:$0xf]
  %v52 = vld [vmem:[%s1 + $0x2c] sm:$0xf]
  %v53 = vld [vmem:[%s1 + $0x30] sm:$0xf]
  %v54 = vld [vmem:[%s1 + $0x34] sm:$0xf]
  %v55 = vld [vmem:[%s1 + $0x38] sm:$0xf]
  %v56 = vld [vmem:[%s1 + $0x3c] sm:$0xf]
  %v57 = vld [vmem:[%s1 + $0x40] sm:$0xf]
  %v58 = vld [vmem:[%s1 + $0x44] sm:$0xf]
  %v59 = vld [vmem:[%s1 + $0x48] sm:$0xf]
  %v60 = vld [vmem:[%s1 + $0x4c] sm:$0xf]
  %v61 = vld [vmem:[%s1 + $0x50] sm:$0xf]
  %v62 = vld [vmem:[%s1 + $0x54] sm:$0xf]
  %v63 = vld [vmem:[%s1 + $0x58] sm:$0xf]
  %v64 = vld [vmem:[%s1 + $0x5c] sm:$0xf]
  %v65 = vld [vmem:[%s1 + $0x60] sm:$0xf]
  %v66 = vld [vmem:[%s1 + $0x64] sm:$0xf]
  %v67 = vld [vmem:[%s1 + $0x68] sm:$0xf]
  %v68 = vld [vmem:[%s1 + $0x6c] sm:$0xf]
  %v69 = vld [vmem:[%s1 + $0x70] sm:$0xf]
  %v70 = vld [vmem:[%s1 + $0x74] sm:$0xf]
  %v71 = vld [vmem:[%s1 + $0x78] sm:$0xf]
  %v72 = vld [vmem:[%s1 + $0x7c] sm:$0xf]
  %v73 = vld [vmem:[%s1 + $0x80] sm:$0xf]
  %v74 = vld [vmem:[%s1 + $0x84] sm:$0xf]
  %v75 = vld [vmem:[%s1 + $0x88] sm:$0xf]
  %v76 = vld [vmem:[%s1 + $0x8c] sm:$0xf]
  %v77 = vld [vmem:[%s1 + $0x90] sm:$0xf]
  %v78 = vld [vmem:[%s1 + $0x94] sm:$0xf]
  %v79 = vld [vmem:[%s1 + $0x98] sm:$0xf]
  %v80 = vld [vmem:[%s1 + $0x9c] sm:$0xf]
  %v81 = vld [vmem:[%s1 + $0xa0] sm:$0xf]
  %v82 = vld [vmem:[%s1 + $0xa4] sm:$0xf]
  %v83 = vld [vmem:[%s1 + $0xa8] sm:$0xf]
  %v84 = vld [vmem:[%s1 + $0xac] sm:$0xf]
  %v85 = vld [vmem:[%s1 + $0xb0] sm:$0xf]
  %v86 = vld [vmem:[%s1 + $0xb4] sm:$0xf]
  %v87 = vld [vmem:[%s1 + $0xb8] sm:$0xf]
  %v88 = vld [vmem:[%s1 + $0xbc] sm:$0xf]
  %v89 = vld [vmem:[%s1 + $0xc0] sm:$0xf]
  %v90 = vld [vmem:[%s1 + $0xc4] sm:$0xf]
  %v91 = vld [vmem:[%s1 + $0xc8] sm:$0xf]
  %v92 = vld [vmem:[%s1 + $0xcc] sm:$0xf]
  %v93 = vld [vmem:[%s1 + $0xd0] sm:$0xf]
  %v94 = vld [vmem:[%s1 + $0xd4] sm:$0xf]
  %v95 = vld [vmem:[%s1 + $0xd8] sm:$0xf]
  %v96 = vld [vmem:[%s1 + $0xdc] sm:$0xf]
  %v97 = vld [vmem:[%s1 + $0xe0] sm:$0xf]
  %v98 = vld [vmem:[%s1 + $0xe4] sm:$0xf]
  %v99 = vld [vmem:[%s1 + $0xe8] sm:$0xf]
  %v100 = vld [vmem:[%s1 + $0xec] sm:$0xf]
  %v101 = vld [vmem:[%s1 + $0xf0] sm:$0xf]
  %v102 = vld [vmem:[%s1 + $0xf4] sm:$0xf]
  %v103 = vld [vmem:[%s1 + $0xf8] sm:$0xf]
  %v104 = vld [vmem:[%s1 + $0xfc] sm:$0xf]
  %v105 = vld [vmem:[%s1 + $0x100] sm:$0xf]
  %v106 = vld [vmem:[%s1 + $0x104] sm:$0xf]
  %v107 = vld [vmem:[%s1 + $0x108] sm:$0xf]
  %v108 = vld [vmem:[%s1 + $0x10c] sm:$0xf]
  %v109 = vld [vmem:[%s1 + $0x110] sm:$0xf]
  %v110 = vld [vmem:[%s1 + $0x114] sm:$0xf]
  %v111 = vld [vmem:[%s1 + $0x118] sm:$0xf]
  %v112 = vld [vmem:[%s1 + $0x11c] sm:$0xf]
  %v113 = vld [vmem:[%s2] sm:$0x1]
  %v115 = vlaneseq
  %v116 = vshrl.u32 %v115, 7
  %v117 = vsub.s32 0, %v116
  %v118 = vrot.slane %v113, %v117
  %v129 = vunpack.c.l.b16 %v32
  %v130 = vunpack.c.h.b16 %v32
  %v131 = vunpack.c.l.b16 %v33
  %v132 = vunpack.c.h.b16 %v33
  %v133 = vunpack.c.l.b16 %v34
  %v134 = vunpack.c.l.b16 %v35
  %v135 = vunpack.c.h.b16 %v35
  %v136 = vunpack.c.l.b16 %v36
  %v137 = vunpack.c.h.b16 %v36
  %v138 = vunpack.c.l.b16 %v37
  %v139 = vunpack.c.l.b16 %v38
  %v140 = vunpack.c.h.b16 %v38
  %v141 = vunpack.c.l.b16 %v39
  %v142 = vunpack.c.h.b16 %v39
  %v143 = vunpack.c.l.b16 %v40
  %v144 = vpack.c.b16 %v134, %v129
  %v145 = vpack.c.b16 %v135, %v130
  %v146 = vpack.c.b16 %v136, %v131
  %v147 = vpack.c.b16 %v137, %v132
  %v148 = vpack.c.b16 %v138, %v133
  %v149 = vpack.c.b16 %v139, %v139
  %v150 = vpack.c.b16 %v140, %v140
  %v151 = vpack.c.b16 %v141, %v141
  %v152 = vpack.c.b16 %v142, %v142
  %v153 = vpack.c.b16 %v143, %v143
  %v234 = vunpack.c.l.b16 %v41
  %v235 = vunpack.c.l.b16 %v42
  %v236 = vunpack.c.l.b16 %v43
  %v237 = vunpack.c.l.b16 %v44
  %v238 = vunpack.c.l.b16 %v45
  %v239 = vunpack.c.l.b16 %v46
  %v240 = vunpack.c.l.b16 %v47
  %v241 = vunpack.c.l.b16 %v48
  %v242 = vunpack.c.l.b16 %v49
  %v243 = vunpack.c.l.b16 %v50
  %v244 = vunpack.c.l.b16 %v51
  %v245 = vunpack.c.l.b16 %v52
  %v246 = vunpack.c.l.b16 %v53
  %v247 = vunpack.c.l.b16 %v54
  %v248 = vunpack.c.l.b16 %v55
  %v249 = vunpack.c.l.b16 %v56
  %v250 = vunpack.c.l.b16 %v57
  %v251 = vunpack.c.l.b16 %v58
  %v252 = vunpack.c.l.b16 %v59
  %v253 = vunpack.c.l.b16 %v60
  %v254 = vunpack.c.l.b16 %v61
  %v255 = vunpack.c.l.b16 %v62
  %v256 = vunpack.c.l.b16 %v63
  %v257 = vunpack.c.l.b16 %v64
  %v258 = vunpack.c.l.b16 %v65
  %v259 = vunpack.c.l.b16 %v66
  %v260 = vunpack.c.l.b16 %v67
  %v261 = vunpack.c.l.b16 %v68
  %v262 = vunpack.c.l.b16 %v69
  %v263 = vunpack.c.l.b16 %v70
  %v264 = vunpack.c.l.b16 %v71
  %v265 = vunpack.c.l.b16 %v72
  %v266 = vunpack.c.l.b16 %v73
  %v267 = vunpack.c.l.b16 %v74
  %v268 = vunpack.c.l.b16 %v75
  %v269 = vunpack.c.l.b16 %v76
  %v270 = vunpack.c.l.b16 %v77
  %v271 = vunpack.c.l.b16 %v78
  %v272 = vunpack.c.l.b16 %v79
  %v273 = vunpack.c.l.b16 %v80
  %v274 = vunpack.c.l.b16 %v81
  %v275 = vunpack.c.l.b16 %v82
  %v276 = vunpack.c.l.b16 %v83
  %v277 = vunpack.c.l.b16 %v84
  %v278 = vunpack.c.l.b16 %v85
  %v279 = vunpack.c.l.b16 %v86
  %v280 = vunpack.c.l.b16 %v87
  %v281 = vunpack.c.l.b16 %v88
  %v282 = vunpack.c.l.b16 %v89
  %v283 = vunpack.c.l.b16 %v90
  %v284 = vunpack.c.l.b16 %v91
  %v285 = vunpack.c.l.b16 %v92
  %v286 = vunpack.c.l.b16 %v93
  %v287 = vunpack.c.l.b16 %v94
  %v288 = vunpack.c.l.b16 %v95
  %v289 = vunpack.c.l.b16 %v96
  %v290 = vunpack.c.l.b16 %v97
  %v291 = vunpack.c.l.b16 %v98
  %v292 = vunpack.c.l.b16 %v99
  %v293 = vunpack.c.l.b16 %v100
  %v294 = vunpack.c.l.b16 %v101
  %v295 = vunpack.c.l.b16 %v102
  %v296 = vunpack.c.l.b16 %v103
  %v297 = vunpack.c.l.b16 %v104
  %v298 = vunpack.c.l.b16 %v105
  %v299 = vunpack.c.l.b16 %v106
  %v300 = vunpack.c.l.b16 %v107
  %v301 = vunpack.c.l.b16 %v108
  %v302 = vunpack.c.l.b16 %v109
  %v303 = vunpack.c.l.b16 %v110
  %v304 = vunpack.c.l.b16 %v111
  %v305 = vunpack.c.l.b16 %v112
  %v306 = vpack.c.b16 %v235, %v234
  %v307 = vpack.c.b16 %v237, %v236
  %v308 = vpack.c.b16 %v239, %v238
  %v309 = vpack.c.b16 %v241, %v240
  %v310 = vpack.c.b16 %v243, %v242
  %v311 = vpack.c.b16 %v245, %v244
  %v312 = vpack.c.b16 %v247, %v246
  %v313 = vpack.c.b16 %v249, %v248
  %v314 = vpack.c.b16 %v251, %v250
  %v315 = vpack.c.b16 %v253, %v252
  %v316 = vpack.c.b16 %v255, %v254
  %v317 = vpack.c.b16 %v257, %v256
  %v318 = vpack.c.b16 %v259, %v258
  %v319 = vpack.c.b16 %v261, %v260
  %v320 = vpack.c.b16 %v263, %v262
  %v321 = vpack.c.b16 %v265, %v264
  %v322 = vpack.c.b16 %v267, %v266
  %v323 = vpack.c.b16 %v269, %v268
  %v324 = vpack.c.b16 %v271, %v270
  %v325 = vpack.c.b16 %v273, %v272
  %v326 = vpack.c.b16 %v275, %v274
  %v327 = vpack.c.b16 %v277, %v276
  %v328 = vpack.c.b16 %v279, %v278
  %v329 = vpack.c.b16 %v281, %v280
  %v330 = vpack.c.b16 %v283, %v282
  %v331 = vpack.c.b16 %v285, %v284
  %v332 = vpack.c.b16 %v287, %v286
  %v333 = vpack.c.b16 %v289, %v288
  %v334 = vpack.c.b16 %v291, %v290
  %v335 = vpack.c.b16 %v293, %v292
  %v336 = vpack.c.b16 %v295, %v294
  %v337 = vpack.c.b16 %v297, %v296
  %v338 = vpack.c.b16 %v299, %v298
  %v339 = vpack.c.b16 %v301, %v300
  %v340 = vpack.c.b16 %v303, %v302
  %v341 = vpack.c.b16 %v305, %v304
  %vm378 = vcmask 523264
  %v380 = vsel %vm378, %v148, 0
  %v383 = vsel %vm378, %v153, 0
  %385 = vmatprep.subr.bf16.mxu0 0
  %386 = vmatpush1.bf16.msra.mxu0 %v313
  %387 = vmatprep.subr.bf16.mxu0 0
  %388 = vmatpush1.bf16.msra.mxu0 %v312
  %389 = vmatprep.subr.bf16.mxu0 0
  %390 = vmatpush1.bf16.msra.mxu0 %v311
  %391 = vmatprep.subr.bf16.mxu0 0
  %392 = vmatpush1.bf16.msra.mxu0 %v310
  %393 = vmatprep.subr.bf16.mxu0 0
  %394 = vmatpush1.bf16.msra.mxu0 %v309
  %395 = vmatprep.subr.bf16.mxu0 0
  %396 = vmatpush1.bf16.msra.mxu0 %v308
  %397 = vmatprep.subr.bf16.mxu0 0
  %398 = vmatpush1.bf16.msra.mxu0 %v307
  %399 = vmatprep.subr.bf16.mxu0 0
  %400 = vmatpush1.bf16.msra.mxu0 %v306
  %401 = vmatprep.subr.bf16.mxu0 0
  %402 = vmatpush2.bf16.msra.mxu0 %v321
  %403 = vmatprep.subr.bf16.mxu0 0
  %404 = vmatpush2.bf16.msra.mxu0 %v320
  %405 = vmatprep.subr.bf16.mxu0 0
  %406 = vmatpush2.bf16.msra.mxu0 %v319
  %407 = vmatprep.subr.bf16.mxu0 0
  %408 = vmatpush2.bf16.msra.mxu0 %v318
  %409 = vmatprep.subr.bf16.mxu0 0
  %410 = vmatpush2.bf16.msra.mxu0 %v317
  %411 = vmatprep.subr.bf16.mxu0 0
  %412 = vmatpush2.bf16.msra.mxu0 %v316
  %413 = vmatprep.subr.bf16.mxu0 0
  %414 = vmatpush2.bf16.msra.mxu0 %v315
  %415 = vmatprep.subr.bf16.mxu0 0
  %416 = vmatpush2.bf16.msra.mxu0 %v314
  %417 = vmatprep.mubr.bf16.mxu0 %v145
  %418 = vmatmul.mubr.bf16.gmra.mxu0 %v144
  %v419 = vpop.f32.mrf.mxu0
  %v420 = vadd.f32 %v118, %v419
  %v421 = vpop.f32.mrf.mxu0
  %v422 = vpop.f32.mrf.mxu0
  %v423 = vadd.f32 %v118, %v422
  %v424 = vpop.f32.mrf.mxu0
  %425 = vmatprep.mubr.bf16.mxu0 %v150
  %426 = vmatmul.mubr.bf16.gmra.mxu0 %v149
  %v427 = vpop.f32.mrf.mxu0
  %v428 = vadd.f32 %v118, %v427
  %v429 = vpop.f32.mrf.mxu0
  %v430 = vpop.f32.mrf.mxu0
  %v431 = vpop.f32.mrf.mxu0
  %432 = vdwg.mxu0
  %433 = vmatprep.subr.bf16.mxu0 0
  %434 = vmatpush1.bf16.msra.mxu0 %v329
  %435 = vmatprep.subr.bf16.mxu0 0
  %436 = vmatpush1.bf16.msra.mxu0 %v328
  %437 = vmatprep.subr.bf16.mxu0 0
  %438 = vmatpush1.bf16.msra.mxu0 %v327
  %439 = vmatprep.subr.bf16.mxu0 0
  %440 = vmatpush1.bf16.msra.mxu0 %v326
  %441 = vmatprep.subr.bf16.mxu0 0
  %442 = vmatpush1.bf16.msra.mxu0 %v325
  %443 = vmatprep.subr.bf16.mxu0 0
  %444 = vmatpush1.bf16.msra.mxu0 %v324
  %445 = vmatprep.subr.bf16.mxu0 0
  %446 = vmatpush1.bf16.msra.mxu0 %v323
  %447 = vmatprep.subr.bf16.mxu0 0
  %448 = vmatpush1.bf16.msra.mxu0 %v322
  %449 = vmatprep.subr.bf16.mxu0 0
  %450 = vmatpush2.bf16.msra.mxu0 %v337
  %451 = vmatprep.subr.bf16.mxu0 0
  %452 = vmatpush2.bf16.msra.mxu0 %v336
  %453 = vmatprep.subr.bf16.mxu0 0
  %454 = vmatpush2.bf16.msra.mxu0 %v335
  %455 = vmatprep.subr.bf16.mxu0 0
  %456 = vmatpush2.bf16.msra.mxu0 %v334
  %457 = vmatprep.subr.bf16.mxu0 0
  %458 = vmatpush2.bf16.msra.mxu0 %v333
  %459 = vmatprep.subr.bf16.mxu0 0
  %460 = vmatpush2.bf16.msra.mxu0 %v332
  %461 = vmatprep.subr.bf16.mxu0 0
  %462 = vmatpush2.bf16.msra.mxu0 %v331
  %463 = vmatprep.subr.bf16.mxu0 0
  %464 = vmatpush2.bf16.msra.mxu0 %v330
  %465 = vmatprep.mubr.bf16.mxu0 %v147
  %466 = vmatmul.mubr.bf16.gmra.mxu0 %v146
  %v467 = vpop.f32.mrf.mxu0
  %v468 = vadd.f32 %v420, %v467
  %v469 = vpop.f32.mrf.mxu0
  %v470 = vpop.f32.mrf.mxu0
  %v471 = vadd.f32 %v423, %v470
  %v472 = vpop.f32.mrf.mxu0
  %473 = vmatprep.mubr.bf16.mxu0 %v152
  %474 = vmatmul.mubr.bf16.gmra.mxu0 %v151
  %v475 = vpop.f32.mrf.mxu0
  %v476 = vadd.f32 %v428, %v475
  %v477 = vpop.f32.mrf.mxu0
  %v478 = vpop.f32.mrf.mxu0
  %v479 = vpop.f32.mrf.mxu0
  %480 = vdwg.mxu0
  %481 = vmatprep.subr.bf16.mxu0 0
  %482 = vmatpush1.bf16.msra.mxu0 0
  %483 = vmatprep.subr.bf16.mxu0 0
  %484 = vmatpush1.bf16.msra.mxu0 0
  %485 = vmatprep.subr.bf16.mxu0 0
  %486 = vmatpush1.bf16.msra.mxu0 0
  %487 = vmatprep.subr.bf16.mxu0 0
  %488 = vmatpush1.bf16.msra.mxu0 0
  %489 = vmatprep.subr.bf16.mxu0 0
  %490 = vmatpush1.bf16.msra.mxu0 %v341
  %491 = vmatprep.subr.bf16.mxu0 0
  %492 = vmatpush1.bf16.msra.mxu0 %v340
  %493 = vmatprep.subr.bf16.mxu0 0
  %494 = vmatpush1.bf16.msra.mxu0 %v339
  %495 = vmatprep.subr.bf16.mxu0 0
  %496 = vmatpush1.bf16.msra.mxu0 %v338
  %497 = vmatprep.subr.bf16.mxu0 0
  %498 = vmatpush2.bf16.msra.mxu0 0
  %499 = vmatprep.subr.bf16.mxu0 0
  %500 = vmatpush2.bf16.msra.mxu0 0
  %501 = vmatprep.subr.bf16.mxu0 0
  %502 = vmatpush2.bf16.msra.mxu0 0
  %503 = vmatprep.subr.bf16.mxu0 0
  %504 = vmatpush2.bf16.msra.mxu0 0
  %505 = vmatprep.subr.bf16.mxu0 0
  %506 = vmatpush2.bf16.msra.mxu0 0
  %507 = vmatprep.subr.bf16.mxu0 0
  %508 = vmatpush2.bf16.msra.mxu0 0
  %509 = vmatprep.subr.bf16.mxu0 0
  %510 = vmatpush2.bf16.msra.mxu0 0
  %511 = vmatprep.subr.bf16.mxu0 0
  %512 = vmatpush2.bf16.msra.mxu0 0
  %513 = vmatprep.mubr.bf16.mxu0 0
  %514 = vmatmul.mubr.bf16.gmra.mxu0 %v380
  %v515 = vpop.f32.mrf.mxu0
  %v516 = vadd.f32 %v468, %v515
  %v517 = vpop.f32.mrf.mxu0
  %v518 = vpop.f32.mrf.mxu0
  %v519 = vadd.f32 %v471, %v518
  %v520 = vpop.f32.mrf.mxu0
  %521 = vmatprep.mubr.bf16.mxu0 0
  %522 = vmatmul.mubr.bf16.gmra.mxu0 %v383
  %v523 = vpop.f32.mrf.mxu0
  %v524 = vadd.f32 %v476, %v523
  %v525 = vpop.f32.mrf.mxu0
  %v526 = vpop.f32.mrf.mxu0
  %v527 = vpop.f32.mrf.mxu0
  %528 = vdwg.mxu0
  %v529 = vadd.f32 %v516, %v519
  %vm530 = vcmask 1041408
  %v531 = vsel %vm530, %v524, 0.0
  %v532 = vadd.f32 %v529, %v531
  %v533 = vrot.slane %v532, 4
  %v534 = vadd.f32 %v532, %v533
  %v535 = vrot.slane %v534, 2
  %v536 = vadd.f32 %v534, %v535
  %v537 = vrot.slane %v536, 1
  %v538 = vadd.f32 %v536, %v537
  %v539 = vrcp.pop 18.0
  %v540 = vmul.f32 %v538, %v539
  %v541 = vsub.f32 %v516, %v540
  %v542 = vsub.f32 %v519, %v540
  %v543 = vsub.f32 %v524, %v540
  %v544 = vmul.f32 %v541, %v541
  %v545 = vmul.f32 %v542, %v542
  %v546 = vmul.f32 %v543, %v543
  %v547 = vadd.f32 %v544, %v545
  %v548 = vsel %vm530, %v546, 0.0
  %v549 = vadd.f32 %v547, %v548
  %v550 = vrot.slane %v549, 4
  %v551 = vadd.f32 %v549, %v550
  %v552 = vrot.slane %v551, 2
  %v553 = vadd.f32 %v551, %v552
  %v554 = vrot.slane %v553, 1
  %v555 = vadd.f32 %v553, %v554
  %v556 = vmul.f32 %v555, %v539
  %v557 = vld [vmem:[%s3] sm:$0x1]
  %v558 = vadd.f32 %v556, 1e-05
  %v559 = vrsqrt.pop %v558
  %v560 = vmul.f32 %v557, %v559
  %v562 = vlaneseq
  %v563 = vshrl.u32 %v562, 7
  %v564 = vsub.s32 0, %v563
  %v565 = vrot.slane %v560, %v564
  %v567 = vmul.f32 %v541, %v565
  %v568 = vmul.f32 %v542, %v565
  %v569 = vmul.f32 %v543, %v565
  %v570 = vld [vmem:[%s4] sm:$0x1]
  %v572 = vlaneseq
  %v573 = vshrl.u32 %v572, 7
  %v574 = vsub.s32 0, %v573
  %v575 = vrot.slane %v570, %v574
  %v577 = vadd.f32 %v567, %v575
  %v578 = vadd.f32 %v568, %v575
  %v579 = vadd.f32 %v569, %v575
  %v580 = vmul.f32 %v577, 0.01
  %v581 = vmul.f32 %v578, 0.01
  %v582 = vmul.f32 %v579, 0.01
  %v583 = vmax.f32 %v577, %v580
  %v584 = vmax.f32 %v578, %v581
  %v585 = vmax.f32 %v579, %v582
  %v586 = vld [vmem:[%s5] sm:$0xff]
  %v587 = vld [vmem:[%s5 + $0x8] sm:$0xff]
  %v588 = vld [vmem:[%s5 + $0x10] sm:$0x3]
  %v589 = vmul.f32 %v583, %v586
  %v590 = vmul.f32 %v584, %v587
  %v591 = vmul.f32 %v585, %v588
  %v592 = vld [vmem:[%s6] sm:$0x3]
  %vm593 = vcmask 146432
  %v595 = vsel %vm593, %v592, 0
  %v598 = vsel %vm530, %v591, 0
  %600 = vmatprep.subr.mxu0 0.0
  %601 = vmatpush1.msra.mxu0 0.0
  %602 = vmatprep.subr.mxu0 0.0
  %603 = vmatpush1.msra.mxu0 0.0
  %604 = vmatprep.subr.mxu0 0.0
  %605 = vmatpush1.msra.mxu0 0.0
  %606 = vmatprep.subr.mxu0 0.0
  %607 = vmatpush1.msra.mxu0 0.0
  %608 = vmatprep.subr.mxu0 0.0
  %609 = vmatpush1.msra.mxu0 0.0
  %610 = vmatprep.subr.mxu0 0.0
  %611 = vmatpush1.msra.mxu0 0.0
  %612 = vmatprep.subr.mxu0 0.0
  %613 = vmatpush1.msra.mxu0 0.0
  %614 = vmatprep.subr.mxu0 0.0
  %615 = vmatpush1.msra.mxu0 0.0
  %616 = vmatprep.subr.mxu0 0.0
  %617 = vmatpush1.msra.mxu0 0.0
  %618 = vmatprep.subr.mxu0 0.0
  %619 = vmatpush1.msra.mxu0 0.0
  %620 = vmatprep.subr.mxu0 0.0
  %621 = vmatpush1.msra.mxu0 0.0
  %622 = vmatprep.subr.mxu0 0.0
  %623 = vmatpush1.msra.mxu0 0.0
  %624 = vmatprep.subr.mxu0 0.0
  %625 = vmatpush1.msra.mxu0 0.0
  %626 = vmatprep.subr.mxu0 0.0
  %627 = vmatpush1.msra.mxu0 %v598
  %628 = vmatprep.subr.mxu0 0.0
  %629 = vmatpush1.msra.mxu0 %v590
  %630 = vmatprep.subr.mxu0 0.0
  %631 = vmatpush1.msra.mxu0 %v589
  %632 = vmatprep.subr.mxu0 0.0
  %633 = vmatpush2.msra.mxu0 0.0
  %634 = vmatprep.subr.mxu0 0.0
  %635 = vmatpush2.msra.mxu0 0.0
  %636 = vmatprep.subr.mxu0 0.0
  %637 = vmatpush2.msra.mxu0 0.0
  %638 = vmatprep.subr.mxu0 0.0
  %639 = vmatpush2.msra.mxu0 0.0
  %640 = vmatprep.subr.mxu0 0.0
  %641 = vmatpush2.msra.mxu0 0.0
  %642 = vmatprep.subr.mxu0 0.0
  %643 = vmatpush2.msra.mxu0 0.0
  %644 = vmatprep.subr.mxu0 0.0
  %645 = vmatpush2.msra.mxu0 0.0
  %646 = vmatprep.subr.mxu0 0.0
  %647 = vmatpush2.msra.mxu0 0.0
  %648 = vmatprep.subr.mxu0 0.0
  %649 = vmatpush2.msra.mxu0 0.0
  %650 = vmatprep.subr.mxu0 0.0
  %651 = vmatpush2.msra.mxu0 0.0
  %652 = vmatprep.subr.mxu0 0.0
  %653 = vmatpush2.msra.mxu0 0.0
  %654 = vmatprep.subr.mxu0 0.0
  %655 = vmatpush2.msra.mxu0 0.0
  %656 = vmatprep.subr.mxu0 0.0
  %657 = vmatpush2.msra.mxu0 0.0
  %658 = vmatprep.subr.mxu0 0.0
  %659 = vmatpush2.msra.mxu0 0.0
  %660 = vmatprep.subr.mxu0 0.0
  %661 = vmatpush2.msra.mxu0 0.0
  %662 = vmatprep.subr.mxu0 0.0
  %663 = vmatpush2.msra.mxu0 0.0
  %664 = vmatprep.mubr.f32.mxu0 0.0
  %665 = vmatmul.mubr.f32.gmra.mxu0 %v595
  %v666 = vpop.f32.mrf.mxu0
  %v667 = vadd.f32 0.0, %v666
  %v668 = vpop.f32.mrf.mxu0
  %669 = vdwg.mxu0
  %v670 = vsel %vm530, %v667, 0.0
  %671 = vadd.xlane.f32.xlu0 %v670
  %v672 = vpop.xlane.xlu0 %671
  %v673 = vld [vmem:[#allocation2] sm:$0x1]
  %v675 = vlaneseq
  %v676 = vshrl.u32 %v675, 7
  %v677 = vsub.s32 0, %v676
  %v678 = vrot.slane %v673, %v677
  %v680 = vadd.f32 %v672, %v678
  %v681 = vsub.f32 0.0, %v680
  %v682 = vmul.f32 %v681, 1.442695
  %v683 = vpow.pop %v682
  %v684 = vadd.f32 %v683, 1.0
  %v685 = vrcp.pop %v684
  %687 = vset.pattern.permute.xlu0 0
  %688 = vperm.xlu0 %687, %v685
  %v689 = vpop.permute.xlu0 %688
  %691 = vst [vmem:[%s8] sm:$0x3] %v689
  // Predicated region
  $region34: #{_lambda_.5} parent=0 // pred_check
    _
  $region35: #{_lambda_.5} parent=0 // pred_check_branch
    %693 = sbr.rel (0) target = $region37
  $region36: #{_lambda_.5} parent=0 // pred_region
    _
  $region37: #{_lambda_.5} parent=0 // pred_fallthru
    _
  // Predicated region
  $region38: #{_lambda_.5} parent=0 // pred_check
    _
  $region39: #{_lambda_.5} parent=0 // pred_check_branch
    %695 = sbr.rel (0) target = $region41
  $region40: #{_lambda_.5} parent=0 // pred_region
    _
  $region41: #{_lambda_.5} parent=0 // pred_fallthru
    _

</llo_original>
